<compile_context>
chip_gen: v5e
topology: v5e:2x2
jax: 0.10.0
libtpu: 0.0.40
codegen_flags: <defaults>
</compile_context>

<pallas_src>
import functools

import jax
import jax.numpy as jnp
import numpy as np
from jax.experimental import pallas as pl
from jax.experimental.pallas import tpu as pltpu


# ---------------------------------------------------------------------------
# One-time weight preparation (NOT on the per-call path).
# ---------------------------------------------------------------------------
def prepare_params(w_ih, w_hh, b_ih, b_hh, w_out, b_out):
    """Convert PyTorch-layout LSTM/Linear params to kernel layout, once.

    PyTorch layouts: w_ih (4H, I), w_hh (4H, H), b_ih/b_hh (4H,),
                     w_out (O, H), b_out (O,).  Gate order [i | f | g | o].

    Kernel layout (f32, hidden padded to Hp = multiple of 128):
      wih_p  (I,  4*Hp)   gate-blocked columns, zero padded
      whh_p  (Hp, 4*Hp)   zero padded rows and columns
      bias_p (1,  4*Hp)   b_ih + b_hh, gate-blocked, zero padded
      wout_p (Hp, O)      zero padded rows
      bout_p (1,  O)
    """
    H = w_hh.shape[1]
    O = w_out.shape[0]
    Hp = max(128, ((H + 127) // 128) * 128)

    def pad_gate_cols(w_t):  # (rows, 4H) -> (rows, 4Hp), per-gate zero padding
        rows = w_t.shape[0]
        out = jnp.zeros((rows, 4 * Hp), jnp.float32)
        for g in range(4):
            out = out.at[:, g * Hp:g * Hp + H].set(w_t[:, g * H:(g + 1) * H])
        return out

    wih_t = jnp.transpose(w_ih).astype(jnp.float32)            # (I, 4H)
    whh_t = jnp.transpose(w_hh).astype(jnp.float32)            # (H, 4H)
    wih_p = pad_gate_cols(wih_t)                                # (I, 4Hp)
    whh_p = jnp.zeros((Hp, 4 * Hp), jnp.float32).at[:H, :].set(pad_gate_cols(whh_t))
    bias_p = pad_gate_cols((b_ih + b_hh).astype(jnp.float32).reshape(1, 4 * H))
    wout_p = jnp.zeros((Hp, O), jnp.float32).at[:H, :].set(
        jnp.transpose(w_out).astype(jnp.float32))
    bout_p = b_out.reshape(1, O).astype(jnp.float32)

    params = (wih_p, whh_p, bias_p, wout_p, bout_p)
    return jax.tree_util.tree_map(jax.device_put, params)


# ---------------------------------------------------------------------------
# Kernel.
# ---------------------------------------------------------------------------
def _lstm_rnn_kernel(x_ref, wih_ref, whh_ref, b_ref, wout_ref, bout_ref,
                     out_ref, *, T, B, Hp):
    # Hoisted input projection: one (T*B, I) @ (I, 4Hp) MXU call, bias fused.
    xg = (
        jnp.dot(x_ref[...], wih_ref[...], preferred_element_type=jnp.float32)
        + b_ref[...]
    )  # (T*B, 4Hp)

    h = jnp.zeros((B, Hp), jnp.float32)
    c = jnp.zeros((B, Hp), jnp.float32)

    # T is static & tiny -> trace-time unroll; t is a concrete Python int, so
    # the per-step xg read is a static sublane slice (no dynamic address math)
    # and the LLO scheduler can interleave MXU/EUP/VPU across steps.
    for t in range(T):
        gates = (
            xg[t * B:(t + 1) * B, :]
            + jnp.dot(h, whh_ref[...], preferred_element_type=jnp.float32)
        )  # (B, 4Hp)

        # All gate slices are 128-lane aligned (Hp = 128k): no lane relayouts.
        # One wide sigmoid pass (the unused g block rides along for free in
        # the EUP slot) + one 128-lane tanh.
        sig = jax.nn.sigmoid(gates)
        i_g = sig[:, 0:Hp]
        f_g = sig[:, Hp:2 * Hp]
        o_g = sig[:, 3 * Hp:4 * Hp]
        g_g = jnp.tanh(gates[:, 2 * Hp:3 * Hp])

        c = f_g * c + i_g * g_g
        h = o_g * jnp.tanh(c)

    # hidden2Cat on the last hidden state, then log_softmax(dim=1).
    logits = (
        jnp.dot(h, wout_ref[...], preferred_element_type=jnp.float32)
        + bout_ref[...]
    )  # (B, O)
    m = jnp.max(logits, axis=1, keepdims=True)
    lse = jnp.log(jnp.sum(jnp.exp(logits - m), axis=1, keepdims=True)) + m
    out_ref[...] = logits - lse


# ---------------------------------------------------------------------------
# Per-call wrapper (only a free contiguous reshape of x, then the kernel).
# ---------------------------------------------------------------------------
@jax.jit
def rnn_forward(x, params):
    """x: (T, B, I) float32; params from prepare_params. Returns (B, O)."""
    wih_p, whh_p, bias_p, wout_p, bout_p = params
    T, B, I = x.shape
    Hp = whh_p.shape[0]
    O = wout_p.shape[1]

    # Row-major contiguous reshape -> bitcast, no data movement.
    x_flat = x.reshape(T * B, I).astype(jnp.float32)

    vmem = pl.BlockSpec(memory_space=pltpu.MemorySpace.VMEM)
    kernel = functools.partial(_lstm_rnn_kernel, T=T, B=B, Hp=Hp)
    return pl.pallas_call(
        kernel,
        out_shape=jax.ShapeDtypeStruct((B, O), jnp.float32),
        in_specs=[vmem] * 6,
        out_specs=vmem,
    )(x_flat, wih_p, whh_p, bias_p, wout_p, bout_p)


# ---------------------------------------------------------------------------
# Pure-JAX reference mirroring PyTorch nn.LSTM + Linear + log_softmax.
# ---------------------------------------------------------------------------
def _reference(x, w_ih, w_hh, b_ih, b_hh, w_out, b_out):
    T, B, _ = x.shape
    H = w_hh.shape[1]
    h = jnp.zeros((B, H), jnp.float32)
    c = jnp.zeros((B, H), jnp.float32)
    for t in range(T):
        gates = x[t] @ w_ih.T + b_ih + h @ w_hh.T + b_hh
        i_g = jax.nn.sigmoid(gates[:, 0:H])
        f_g = jax.nn.sigmoid(gates[:, H:2 * H])
        g_g = jnp.tanh(gates[:, 2 * H:3 * H])
        o_g = jax.nn.sigmoid(gates[:, 3 * H:4 * H])
        c = f_g * c + i_g * g_g
        h = o_g * jnp.tanh(c)
    logits = h @ w_out.T + b_out
    return jax.nn.log_softmax(logits, axis=1)


if __name__ == "__main__":
    # Shapes consistent with the module: hidden init is (1, 1, H) -> B=1.
    T, B, I, H, O = 8, 1, 8, 32, 16

    key = jax.random.PRNGKey(0)
    ks = jax.random.split(key, 8)
    k = 1.0 / np.sqrt(H)  # PyTorch default uniform(-1/sqrt(H), 1/sqrt(H))

    w_ih = jax.random.uniform(ks[0], (4 * H, I), jnp.float32, -k, k)
    w_hh = jax.random.uniform(ks[1], (4 * H, H), jnp.float32, -k, k)
    b_ih = jax.random.uniform(ks[2], (4 * H,), jnp.float32, -k, k)
    b_hh = jax.random.uniform(ks[3], (4 * H,), jnp.float32, -k, k)
    w_out = jax.random.uniform(ks[4], (O, H), jnp.float32, -k, k)
    b_out = jax.random.uniform(ks[5], (O,), jnp.float32, -k, k)
    x = jax.random.normal(ks[6], (T, B, I), jnp.float32)

    # One-time weight preparation (off the per-call path).
    params = prepare_params(w_ih, w_hh, b_ih, b_hh, w_out, b_out)

    out = rnn_forward(x, params)
    out = jax.block_until_ready(out)

    ref = _reference(x, w_ih, w_hh, b_ih, b_hh, w_out, b_out)
    np.testing.assert_allclose(np.asarray(out), np.asarray(ref),
                               rtol=1e-5, atol=1e-5)

    print("KERNEL_OK")
</pallas_src>

<mosaic_0001>
module attributes {stable_mosaic.version = 11 : i64} {
  func.func @_lstm_rnn_kernel(%arg0: memref<8x8xf32, #tpu.memory_space<vmem>>, %arg1: memref<8x512xf32, #tpu.memory_space<vmem>>, %arg2: memref<128x512xf32, #tpu.memory_space<vmem>>, %arg3: memref<1x512xf32, #tpu.memory_space<vmem>>, %arg4: memref<128x16xf32, #tpu.memory_space<vmem>>, %arg5: memref<1x16xf32, #tpu.memory_space<vmem>>, %arg6: memref<1x16xf32, #tpu.memory_space<vmem>>) attributes {dimension_semantics = [], scalar_prefetch = 0 : i64, scratch_operands = 0 : i64, tpu.core_type = #tpu.core_type<tc>} {
    %c0 = arith.constant 0 : index
    %c0_0 = arith.constant 0 : index
    %0 = vector.load %arg0[%c0, %c0_0] : memref<8x8xf32, #tpu.memory_space<vmem>>, vector<8x8xf32>
    %c0_1 = arith.constant 0 : index
    %c0_2 = arith.constant 0 : index
    %1 = vector.load %arg1[%c0_1, %c0_2] : memref<8x512xf32, #tpu.memory_space<vmem>>, vector<8x512xf32>
    %cst = arith.constant dense<0.000000e+00> : vector<8x512xf32>
    %2 = tpu.matmul %0, %1, %cst {dimension_numbers = #tpu.dot_dimension_numbers<[1], [0], [0], [1], [0, 0, 1, 1], [], []>} : vector<8x8xf32>, vector<8x512xf32>, vector<8x512xf32> -> vector<8x512xf32>
    %c0_3 = arith.constant 0 : index
    %c0_4 = arith.constant 0 : index
    %3 = vector.load %arg3[%c0_3, %c0_4] : memref<1x512xf32, #tpu.memory_space<vmem>>, vector<1x512xf32>
    %4 = vector.broadcast %3 : vector<1x512xf32> to vector<8x512xf32>
    %5 = arith.addf %2, %4 : vector<8x512xf32>
    %cst_5 = arith.constant 0.000000e+00 : f32
    %6 = vector.broadcast %cst_5 : f32 to vector<1x128xf32>
    %cst_6 = arith.constant 0.000000e+00 : f32
    %7 = vector.broadcast %cst_6 : f32 to vector<1x128xf32>
    %8 = vector.extract_strided_slice %5 {offsets = [0, 0], sizes = [1, 512], strides = [1, 1]} : vector<8x512xf32> to vector<1x512xf32>
    %c0_7 = arith.constant 0 : index
    %c0_8 = arith.constant 0 : index
    %9 = vector.load %arg2[%c0_7, %c0_8] : memref<128x512xf32, #tpu.memory_space<vmem>>, vector<128x512xf32>
    %cst_9 = arith.constant dense<0.000000e+00> : vector<1x512xf32>
    %10 = tpu.matmul %6, %9, %cst_9 {dimension_numbers = #tpu.dot_dimension_numbers<[1], [0], [0], [1], [0, 0, 1, 1], [], []>} : vector<1x128xf32>, vector<128x512xf32>, vector<1x512xf32> -> vector<1x512xf32>
    %11 = arith.addf %8, %10 : vector<1x512xf32>
    %12 = arith.negf %11 : vector<1x512xf32>
    %13 = math.exp %12 : vector<1x512xf32>
    %cst_10 = arith.constant 1.000000e+00 : f32
    %14 = vector.broadcast %cst_10 : f32 to vector<1x512xf32>
    %15 = arith.addf %14, %13 : vector<1x512xf32>
    %16 = arith.divf %14, %15 : vector<1x512xf32>
    %17 = vector.extract_strided_slice %16 {offsets = [0, 0], sizes = [1, 128], strides = [1, 1]} : vector<1x512xf32> to vector<1x128xf32>
    %18 = vector.extract_strided_slice %16 {offsets = [0, 128], sizes = [1, 128], strides = [1, 1]} : vector<1x512xf32> to vector<1x128xf32>
    %19 = vector.extract_strided_slice %16 {offsets = [0, 384], sizes = [1, 128], strides = [1, 1]} : vector<1x512xf32> to vector<1x128xf32>
    %20 = vector.extract_strided_slice %11 {offsets = [0, 256], sizes = [1, 128], strides = [1, 1]} : vector<1x512xf32> to vector<1x128xf32>
    %21 = math.tanh %20 : vector<1x128xf32>
    %22 = arith.mulf %18, %7 : vector<1x128xf32>
    %23 = arith.mulf %17, %21 : vector<1x128xf32>
    %24 = arith.addf %22, %23 : vector<1x128xf32>
    %25 = math.tanh %24 : vector<1x128xf32>
    %26 = arith.mulf %19, %25 : vector<1x128xf32>
    %27 = vector.extract_strided_slice %5 {offsets = [1, 0], sizes = [1, 512], strides = [1, 1]} : vector<8x512xf32> to vector<1x512xf32>
    %c0_11 = arith.constant 0 : index
    %c0_12 = arith.constant 0 : index
    %28 = vector.load %arg2[%c0_11, %c0_12] : memref<128x512xf32, #tpu.memory_space<vmem>>, vector<128x512xf32>
    %cst_13 = arith.constant dense<0.000000e+00> : vector<1x512xf32>
    %29 = tpu.matmul %26, %28, %cst_13 {dimension_numbers = #tpu.dot_dimension_numbers<[1], [0], [0], [1], [0, 0, 1, 1], [], []>} : vector<1x128xf32>, vector<128x512xf32>, vector<1x512xf32> -> vector<1x512xf32>
    %30 = arith.addf %27, %29 : vector<1x512xf32>
    %31 = arith.negf %30 : vector<1x512xf32>
    %32 = math.exp %31 : vector<1x512xf32>
    %cst_14 = arith.constant 1.000000e+00 : f32
    %33 = vector.broadcast %cst_14 : f32 to vector<1x512xf32>
    %34 = arith.addf %33, %32 : vector<1x512xf32>
    %35 = arith.divf %33, %34 : vector<1x512xf32>
    %36 = vector.extract_strided_slice %35 {offsets = [0, 0], sizes = [1, 128], strides = [1, 1]} : vector<1x512xf32> to vector<1x128xf32>
    %37 = vector.extract_strided_slice %35 {offsets = [0, 128], sizes = [1, 128], strides = [1, 1]} : vector<1x512xf32> to vector<1x128xf32>
    %38 = vector.extract_strided_slice %35 {offsets = [0, 384], sizes = [1, 128], strides = [1, 1]} : vector<1x512xf32> to vector<1x128xf32>
    %39 = vector.extract_strided_slice %30 {offsets = [0, 256], sizes = [1, 128], strides = [1, 1]} : vector<1x512xf32> to vector<1x128xf32>
    %40 = math.tanh %39 : vector<1x128xf32>
    %41 = arith.mulf %37, %24 : vector<1x128xf32>
    %42 = arith.mulf %36, %40 : vector<1x128xf32>
    %43 = arith.addf %41, %42 : vector<1x128xf32>
    %44 = math.tanh %43 : vector<1x128xf32>
    %45 = arith.mulf %38, %44 : vector<1x128xf32>
    %46 = vector.extract_strided_slice %5 {offsets = [2, 0], sizes = [1, 512], strides = [1, 1]} : vector<8x512xf32> to vector<1x512xf32>
    %c0_15 = arith.constant 0 : index
    %c0_16 = arith.constant 0 : index
    %47 = vector.load %arg2[%c0_15, %c0_16] : memref<128x512xf32, #tpu.memory_space<vmem>>, vector<128x512xf32>
    %cst_17 = arith.constant dense<0.000000e+00> : vector<1x512xf32>
    %48 = tpu.matmul %45, %47, %cst_17 {dimension_numbers = #tpu.dot_dimension_numbers<[1], [0], [0], [1], [0, 0, 1, 1], [], []>} : vector<1x128xf32>, vector<128x512xf32>, vector<1x512xf32> -> vector<1x512xf32>
    %49 = arith.addf %46, %48 : vector<1x512xf32>
    %50 = arith.negf %49 : vector<1x512xf32>
    %51 = math.exp %50 : vector<1x512xf32>
    %cst_18 = arith.constant 1.000000e+00 : f32
    %52 = vector.broadcast %cst_18 : f32 to vector<1x512xf32>
    %53 = arith.addf %52, %51 : vector<1x512xf32>
    %54 = arith.divf %52, %53 : vector<1x512xf32>
    %55 = vector.extract_strided_slice %54 {offsets = [0, 0], sizes = [1, 128], strides = [1, 1]} : vector<1x512xf32> to vector<1x128xf32>
    %56 = vector.extract_strided_slice %54 {offsets = [0, 128], sizes = [1, 128], strides = [1, 1]} : vector<1x512xf32> to vector<1x128xf32>
    %57 = vector.extract_strided_slice %54 {offsets = [0, 384], sizes = [1, 128], strides = [1, 1]} : vector<1x512xf32> to vector<1x128xf32>
    %58 = vector.extract_strided_slice %49 {offsets = [0, 256], sizes = [1, 128], strides = [1, 1]} : vector<1x512xf32> to vector<1x128xf32>
    %59 = math.tanh %58 : vector<1x128xf32>
    %60 = arith.mulf %56, %43 : vector<1x128xf32>
    %61 = arith.mulf %55, %59 : vector<1x128xf32>
    %62 = arith.addf %60, %61 : vector<1x128xf32>
    %63 = math.tanh %62 : vector<1x128xf32>
    %64 = arith.mulf %57, %63 : vector<1x128xf32>
    %65 = vector.extract_strided_slice %5 {offsets = [3, 0], sizes = [1, 512], strides = [1, 1]} : vector<8x512xf32> to vector<1x512xf32>
    %c0_19 = arith.constant 0 : index
    %c0_20 = arith.constant 0 : index
    %66 = vector.load %arg2[%c0_19, %c0_20] : memref<128x512xf32, #tpu.memory_space<vmem>>, vector<128x512xf32>
    %cst_21 = arith.constant dense<0.000000e+00> : vector<1x512xf32>
    %67 = tpu.matmul %64, %66, %cst_21 {dimension_numbers = #tpu.dot_dimension_numbers<[1], [0], [0], [1], [0, 0, 1, 1], [], []>} : vector<1x128xf32>, vector<128x512xf32>, vector<1x512xf32> -> vector<1x512xf32>
    %68 = arith.addf %65, %67 : vector<1x512xf32>
    %69 = arith.negf %68 : vector<1x512xf32>
    %70 = math.exp %69 : vector<1x512xf32>
    %cst_22 = arith.constant 1.000000e+00 : f32
    %71 = vector.broadcast %cst_22 : f32 to vector<1x512xf32>
    %72 = arith.addf %71, %70 : vector<1x512xf32>
    %73 = arith.divf %71, %72 : vector<1x512xf32>
    %74 = vector.extract_strided_slice %73 {offsets = [0, 0], sizes = [1, 128], strides = [1, 1]} : vector<1x512xf32> to vector<1x128xf32>
    %75 = vector.extract_strided_slice %73 {offsets = [0, 128], sizes = [1, 128], strides = [1, 1]} : vector<1x512xf32> to vector<1x128xf32>
    %76 = vector.extract_strided_slice %73 {offsets = [0, 384], sizes = [1, 128], strides = [1, 1]} : vector<1x512xf32> to vector<1x128xf32>
    %77 = vector.extract_strided_slice %68 {offsets = [0, 256], sizes = [1, 128], strides = [1, 1]} : vector<1x512xf32> to vector<1x128xf32>
    %78 = math.tanh %77 : vector<1x128xf32>
    %79 = arith.mulf %75, %62 : vector<1x128xf32>
    %80 = arith.mulf %74, %78 : vector<1x128xf32>
    %81 = arith.addf %79, %80 : vector<1x128xf32>
    %82 = math.tanh %81 : vector<1x128xf32>
    %83 = arith.mulf %76, %82 : vector<1x128xf32>
    %84 = vector.extract_strided_slice %5 {offsets = [4, 0], sizes = [1, 512], strides = [1, 1]} : vector<8x512xf32> to vector<1x512xf32>
    %c0_23 = arith.constant 0 : index
    %c0_24 = arith.constant 0 : index
    %85 = vector.load %arg2[%c0_23, %c0_24] : memref<128x512xf32, #tpu.memory_space<vmem>>, vector<128x512xf32>
    %cst_25 = arith.constant dense<0.000000e+00> : vector<1x512xf32>
    %86 = tpu.matmul %83, %85, %cst_25 {dimension_numbers = #tpu.dot_dimension_numbers<[1], [0], [0], [1], [0, 0, 1, 1], [], []>} : vector<1x128xf32>, vector<128x512xf32>, vector<1x512xf32> -> vector<1x512xf32>
    %87 = arith.addf %84, %86 : vector<1x512xf32>
    %88 = arith.negf %87 : vector<1x512xf32>
    %89 = math.exp %88 : vector<1x512xf32>
    %cst_26 = arith.constant 1.000000e+00 : f32
    %90 = vector.broadcast %cst_26 : f32 to vector<1x512xf32>
    %91 = arith.addf %90, %89 : vector<1x512xf32>
    %92 = arith.divf %90, %91 : vector<1x512xf32>
    %93 = vector.extract_strided_slice %92 {offsets = [0, 0], sizes = [1, 128], strides = [1, 1]} : vector<1x512xf32> to vector<1x128xf32>
    %94 = vector.extract_strided_slice %92 {offsets = [0, 128], sizes = [1, 128], strides = [1, 1]} : vector<1x512xf32> to vector<1x128xf32>
    %95 = vector.extract_strided_slice %92 {offsets = [0, 384], sizes = [1, 128], strides = [1, 1]} : vector<1x512xf32> to vector<1x128xf32>
    %96 = vector.extract_strided_slice %87 {offsets = [0, 256], sizes = [1, 128], strides = [1, 1]} : vector<1x512xf32> to vector<1x128xf32>
    %97 = math.tanh %96 : vector<1x128xf32>
    %98 = arith.mulf %94, %81 : vector<1x128xf32>
    %99 = arith.mulf %93, %97 : vector<1x128xf32>
    %100 = arith.addf %98, %99 : vector<1x128xf32>
    %101 = math.tanh %100 : vector<1x128xf32>
    %102 = arith.mulf %95, %101 : vector<1x128xf32>
    %103 = vector.extract_strided_slice %5 {offsets = [5, 0], sizes = [1, 512], strides = [1, 1]} : vector<8x512xf32> to vector<1x512xf32>
    %c0_27 = arith.constant 0 : index
    %c0_28 = arith.constant 0 : index
    %104 = vector.load %arg2[%c0_27, %c0_28] : memref<128x512xf32, #tpu.memory_space<vmem>>, vector<128x512xf32>
    %cst_29 = arith.constant dense<0.000000e+00> : vector<1x512xf32>
    %105 = tpu.matmul %102, %104, %cst_29 {dimension_numbers = #tpu.dot_dimension_numbers<[1], [0], [0], [1], [0, 0, 1, 1], [], []>} : vector<1x128xf32>, vector<128x512xf32>, vector<1x512xf32> -> vector<1x512xf32>
    %106 = arith.addf %103, %105 : vector<1x512xf32>
    %107 = arith.negf %106 : vector<1x512xf32>
    %108 = math.exp %107 : vector<1x512xf32>
    %cst_30 = arith.constant 1.000000e+00 : f32
    %109 = vector.broadcast %cst_30 : f32 to vector<1x512xf32>
    %110 = arith.addf %109, %108 : vector<1x512xf32>
    %111 = arith.divf %109, %110 : vector<1x512xf32>
    %112 = vector.extract_strided_slice %111 {offsets = [0, 0], sizes = [1, 128], strides = [1, 1]} : vector<1x512xf32> to vector<1x128xf32>
    %113 = vector.extract_strided_slice %111 {offsets = [0, 128], sizes = [1, 128], strides = [1, 1]} : vector<1x512xf32> to vector<1x128xf32>
    %114 = vector.extract_strided_slice %111 {offsets = [0, 384], sizes = [1, 128], strides = [1, 1]} : vector<1x512xf32> to vector<1x128xf32>
    %115 = vector.extract_strided_slice %106 {offsets = [0, 256], sizes = [1, 128], strides = [1, 1]} : vector<1x512xf32> to vector<1x128xf32>
    %116 = math.tanh %115 : vector<1x128xf32>
    %117 = arith.mulf %113, %100 : vector<1x128xf32>
    %118 = arith.mulf %112, %116 : vector<1x128xf32>
    %119 = arith.addf %117, %118 : vector<1x128xf32>
    %120 = math.tanh %119 : vector<1x128xf32>
    %121 = arith.mulf %114, %120 : vector<1x128xf32>
    %122 = vector.extract_strided_slice %5 {offsets = [6, 0], sizes = [1, 512], strides = [1, 1]} : vector<8x512xf32> to vector<1x512xf32>
    %c0_31 = arith.constant 0 : index
    %c0_32 = arith.constant 0 : index
    %123 = vector.load %arg2[%c0_31, %c0_32] : memref<128x512xf32, #tpu.memory_space<vmem>>, vector<128x512xf32>
    %cst_33 = arith.constant dense<0.000000e+00> : vector<1x512xf32>
    %124 = tpu.matmul %121, %123, %cst_33 {dimension_numbers = #tpu.dot_dimension_numbers<[1], [0], [0], [1], [0, 0, 1, 1], [], []>} : vector<1x128xf32>, vector<128x512xf32>, vector<1x512xf32> -> vector<1x512xf32>
    %125 = arith.addf %122, %124 : vector<1x512xf32>
    %126 = arith.negf %125 : vector<1x512xf32>
    %127 = math.exp %126 : vector<1x512xf32>
    %cst_34 = arith.constant 1.000000e+00 : f32
    %128 = vector.broadcast %cst_34 : f32 to vector<1x512xf32>
    %129 = arith.addf %128, %127 : vector<1x512xf32>
    %130 = arith.divf %128, %129 : vector<1x512xf32>
    %131 = vector.extract_strided_slice %130 {offsets = [0, 0], sizes = [1, 128], strides = [1, 1]} : vector<1x512xf32> to vector<1x128xf32>
    %132 = vector.extract_strided_slice %130 {offsets = [0, 128], sizes = [1, 128], strides = [1, 1]} : vector<1x512xf32> to vector<1x128xf32>
    %133 = vector.extract_strided_slice %130 {offsets = [0, 384], sizes = [1, 128], strides = [1, 1]} : vector<1x512xf32> to vector<1x128xf32>
    %134 = vector.extract_strided_slice %125 {offsets = [0, 256], sizes = [1, 128], strides = [1, 1]} : vector<1x512xf32> to vector<1x128xf32>
    %135 = math.tanh %134 : vector<1x128xf32>
    %136 = arith.mulf %132, %119 : vector<1x128xf32>
    %137 = arith.mulf %131, %135 : vector<1x128xf32>
    %138 = arith.addf %136, %137 : vector<1x128xf32>
    %139 = math.tanh %138 : vector<1x128xf32>
    %140 = arith.mulf %133, %139 : vector<1x128xf32>
    %141 = vector.extract_strided_slice %5 {offsets = [7, 0], sizes = [1, 512], strides = [1, 1]} : vector<8x512xf32> to vector<1x512xf32>
    %c0_35 = arith.constant 0 : index
    %c0_36 = arith.constant 0 : index
    %142 = vector.load %arg2[%c0_35, %c0_36] : memref<128x512xf32, #tpu.memory_space<vmem>>, vector<128x512xf32>
    %cst_37 = arith.constant dense<0.000000e+00> : vector<1x512xf32>
    %143 = tpu.matmul %140, %142, %cst_37 {dimension_numbers = #tpu.dot_dimension_numbers<[1], [0], [0], [1], [0, 0, 1, 1], [], []>} : vector<1x128xf32>, vector<128x512xf32>, vector<1x512xf32> -> vector<1x512xf32>
    %144 = arith.addf %141, %143 : vector<1x512xf32>
    %145 = arith.negf %144 : vector<1x512xf32>
    %146 = math.exp %145 : vector<1x512xf32>
    %cst_38 = arith.constant 1.000000e+00 : f32
    %147 = vector.broadcast %cst_38 : f32 to vector<1x512xf32>
    %148 = arith.addf %147, %146 : vector<1x512xf32>
    %149 = arith.divf %147, %148 : vector<1x512xf32>
    %150 = vector.extract_strided_slice %149 {offsets = [0, 0], sizes = [1, 128], strides = [1, 1]} : vector<1x512xf32> to vector<1x128xf32>
    %151 = vector.extract_strided_slice %149 {offsets = [0, 128], sizes = [1, 128], strides = [1, 1]} : vector<1x512xf32> to vector<1x128xf32>
    %152 = vector.extract_strided_slice %149 {offsets = [0, 384], sizes = [1, 128], strides = [1, 1]} : vector<1x512xf32> to vector<1x128xf32>
    %153 = vector.extract_strided_slice %144 {offsets = [0, 256], sizes = [1, 128], strides = [1, 1]} : vector<1x512xf32> to vector<1x128xf32>
    %154 = math.tanh %153 : vector<1x128xf32>
    %155 = arith.mulf %151, %138 : vector<1x128xf32>
    %156 = arith.mulf %150, %154 : vector<1x128xf32>
    %157 = arith.addf %155, %156 : vector<1x128xf32>
    %158 = math.tanh %157 : vector<1x128xf32>
    %159 = arith.mulf %152, %158 : vector<1x128xf32>
    %c0_39 = arith.constant 0 : index
    %c0_40 = arith.constant 0 : index
    %160 = vector.load %arg4[%c0_39, %c0_40] : memref<128x16xf32, #tpu.memory_space<vmem>>, vector<128x16xf32>
    %cst_41 = arith.constant dense<0.000000e+00> : vector<1x16xf32>
    %161 = tpu.matmul %159, %160, %cst_41 {dimension_numbers = #tpu.dot_dimension_numbers<[1], [0], [0], [1], [0, 0, 1, 1], [], []>} : vector<1x128xf32>, vector<128x16xf32>, vector<1x16xf32> -> vector<1x16xf32>
    %c0_42 = arith.constant 0 : index
    %c0_43 = arith.constant 0 : index
    %162 = vector.load %arg5[%c0_42, %c0_43] : memref<1x16xf32, #tpu.memory_space<vmem>>, vector<1x16xf32>
    %163 = arith.addf %161, %162 : vector<1x16xf32>
    %cst_44 = arith.constant dense<0xFF800000> : vector<1xf32>
    %164 = vector.multi_reduction <maximumf>, %163, %cst_44 [1] : vector<1x16xf32> to vector<1xf32>
    %165 = vector.shape_cast %164 : vector<1xf32> to vector<1x1xf32>
    %166 = vector.broadcast %165 : vector<1x1xf32> to vector<1x16xf32>
    %167 = arith.subf %163, %166 : vector<1x16xf32>
    %168 = math.exp %167 : vector<1x16xf32>
    %cst_45 = arith.constant dense<0.000000e+00> : vector<1xf32>
    %169 = vector.multi_reduction <add>, %168, %cst_45 [1] : vector<1x16xf32> to vector<1xf32>
    %170 = vector.shape_cast %169 : vector<1xf32> to vector<1x1xf32>
    %171 = math.log %170 : vector<1x1xf32>
    %172 = arith.addf %171, %165 : vector<1x1xf32>
    %173 = vector.broadcast %172 : vector<1x1xf32> to vector<1x16xf32>
    %174 = arith.subf %163, %173 : vector<1x16xf32>
    %c0_46 = arith.constant 0 : index
    %c0_47 = arith.constant 0 : index
    %175 = vector.load %arg6[%c0_46, %c0_47] : memref<1x16xf32, #tpu.memory_space<vmem>>, vector<1x16xf32>
    tpu.vector_store %arg6[%c0_46, %c0_47], %174 {strides = array<i32>} : memref<1x16xf32, #tpu.memory_space<vmem>>, vector<1x16xf32>,
    return
  }
}

</mosaic_0001>

<llo_original>
// kernel: rnn_forward.1
$region0: #{rnn_forward.1}
  #allocation0 [shape = 'u32[]', space=smem, size = 0x4, offset = 0x4, fixed_abs, tag = 'smem constant byte address 0x4 - core index']
  #allocation1 [shape = 'u32[72,128]{1,0:T(1,128)}', space=vmem, size = 0x9000, scoped, tag = 'internal scratch']
  %s0 = inlined_call_operand.vmem [shape: f32[8,8], index: 0, kind: input, shape index: {}]
  %s1 = inlined_call_operand.vmem [shape: f32[8,512], index: 1, kind: input, shape index: {}]
  %s2 = inlined_call_operand.hbm [shape: f32[128,512], index: 2, kind: input, shape index: {}]
  %s3 = inlined_call_operand.vmem [shape: f32[1,512], index: 3, kind: input, shape index: {}]
  %s4 = inlined_call_operand.vmem [shape: f32[128,16], index: 4, kind: input, shape index: {}]
  %s5 = inlined_call_operand.vmem [shape: f32[1,16], index: 5, kind: input, shape index: {}]
  %s6 = inlined_call_operand.hbm [shape: f32[1,16], index: 6, kind: output, shape index: {}]
  %s7 = sld [smem:[#allocation0]]
  $region38: #{rnn_forward.1} parent=0
    _
  %s9 = ssub.s32 1, %s7
  %s10 = scalar_select 0, %s9, %s7
  $region1: #{rnn_forward.1} parent=0
    #allocation2 [shape = 'u8[262144]{0}', space=vmem, size = 0x40000, scoped, tag = 'input window, operand 2, single buffered']
    #allocation3 [shape = 's32[1]{0}', space=sflag, size = 0x4, scoped, tag = 'scoped memory for rnn_forward.1']
    #allocation4 [shape = 's32[1]{0}', space=sflag, size = 0x4, scoped, tag = 'scoped memory for rnn_forward.1']
    #allocation5 [shape = 'u8[512]{0}', space=vmem, size = 0x400, scoped, tag = 'output window, operand 0, single buffered']
    %11 = vsyncpa [#allocation3], 0
    %12 = vsyncpa [#allocation4], 0
    // Predicated region
    $region2: #{rnn_forward.1} parent=1 // pred_check
      _
    $region3: #{rnn_forward.1} parent=1 // pred_check_branch
      %14 = sbr.rel (0) target = $region5
    $region4: #{rnn_forward.1} parent=1 // pred_region
      _
    $region5: #{rnn_forward.1} parent=1 // pred_fallthru
      _
    // Predicated region
    $region6: #{rnn_forward.1} parent=1 // pred_check
      _
    $region7: #{rnn_forward.1} parent=1 // pred_check_branch
      %16 = sbr.rel (0) target = $region9
    $region8: #{rnn_forward.1} parent=1 // pred_region
      _
    $region9: #{rnn_forward.1} parent=1 // pred_fallthru
      _
    // Predicated region
    $region10: #{rnn_forward.1} parent=1 // pred_check
      _
    $region11: #{rnn_forward.1} parent=1 // pred_check_branch
      %18 = sbr.rel (0) target = $region13
    $region12: #{rnn_forward.1} parent=1 // pred_region
      %20 = vsyncadd [#allocation3], 0
      %s21 = sshll.u32 %s2, 4
      %s22 = int_to_ptr.hbm [resolvable:$true] %s21
      %s23 = sshll.u32 [#allocation2], 4
      %s24 = int_to_ptr.vmem [resolvable:$true] %s23
      %29 = dma.hbm_to_vmem [thread:$0]  %s22, 8192, %s24, [#allocation3], 512, 512, 32
    $region13: #{rnn_forward.1} parent=1 // pred_fallthru
      _
    // Predicated region
    $region14: #{rnn_forward.1} parent=1 // pred_check
      _
    $region15: #{rnn_forward.1} parent=1 // pred_check_branch
      %31 = sbr.rel (0) target = $region17
    $region16: #{rnn_forward.1} parent=1 // pred_region
      _
    $region17: #{rnn_forward.1} parent=1 // pred_fallthru
      _
    // Predicated region
    $region18: #{rnn_forward.1} parent=1 // pred_check
      _
    $region19: #{rnn_forward.1} parent=1 // pred_check_branch
      %33 = sbr.rel (0) target = $region21
    $region20: #{rnn_forward.1} parent=1 // pred_region
      _
    $region21: #{rnn_forward.1} parent=1 // pred_fallthru
      _
    // Predicated region
    $region22: #{rnn_forward.1} parent=1 // pred_check
      _
    $region23: #{rnn_forward.1} parent=1 // pred_check_branch
      %35 = sbr.rel (0) target = $region25
    $region24: #{rnn_forward.1} parent=1 // pred_region
      _
    $region25: #{rnn_forward.1} parent=1 // pred_fallthru
      _
    // Predicated region
    $region26: #{rnn_forward.1} parent=1 // pred_check
      _
    $region27: #{rnn_forward.1} parent=1 // pred_check_branch
      %37 = sbr.rel (0) target = $region29
    $region28: #{rnn_forward.1} parent=1 // pred_region
      %39 = dma.done [#allocation3], 8192
    $region29: #{rnn_forward.1} parent=1 // pred_fallthru
      _
    %v40 = vld [vmem:[%s0] sm:$0xff]
    %v41 = vld [vmem:[%s1] sm:$0xff]
    %v42 = vld [vmem:[%s1 + $0x8] sm:$0xff]
    %v43 = vld [vmem:[%s1 + $0x10] sm:$0xff]
    %v44 = vld [vmem:[%s1 + $0x18] sm:$0xff]
    %v45 = vld [vmem:[%s3] sm:$0xf]
    %v47 = vperm.slane %v45, 0
    %v48 = vperm.slane %v45, 1
    %v49 = vperm.slane %v45, 2
    %v50 = vperm.slane %v45, 3
    %vm55 = vcmask 64512
    %v57 = vsel %vm55, %v40, 0
    %59 = vmatpush.msra.mxu0 0.0
    %60 = vmatpush.msra.mxu0 0.0
    %61 = vmatpush.msra.mxu0 0.0
    %62 = vmatpush.msra.mxu0 0.0
    %63 = vmatpush.msra.mxu0 0.0
    %64 = vmatpush.msra.mxu0 0.0
    %65 = vmatpush.msra.mxu0 0.0
    %66 = vmatpush.msra.mxu0 0.0
    %67 = vmatpush.msra.mxu0 0.0
    %68 = vmatpush.msra.mxu0 0.0
    %69 = vmatpush.msra.mxu0 0.0
    %70 = vmatpush.msra.mxu0 0.0
    %71 = vmatpush.msra.mxu0 0.0
    %72 = vmatpush.msra.mxu0 0.0
    %73 = vmatpush.msra.mxu0 0.0
    %74 = vmatpush.msra.mxu0 %v41
    %75 = vmatmul.f32.gmra.mxu0 %v57
    %v76 = vpop.f32.mrf.mxu0
    %v77 = vadd.f32 %v47, %v76
    %78 = vdwg.mxu0
    %79 = vmatpush.msra.mxu0 0.0
    %80 = vmatpush.msra.mxu0 0.0
    %81 = vmatpush.msra.mxu0 0.0
    %82 = vmatpush.msra.mxu0 0.0
    %83 = vmatpush.msra.mxu0 0.0
    %84 = vmatpush.msra.mxu0 0.0
    %85 = vmatpush.msra.mxu0 0.0
    %86 = vmatpush.msra.mxu0 0.0
    %87 = vmatpush.msra.mxu0 0.0
    %88 = vmatpush.msra.mxu0 0.0
    %89 = vmatpush.msra.mxu0 0.0
    %90 = vmatpush.msra.mxu0 0.0
    %91 = vmatpush.msra.mxu0 0.0
    %92 = vmatpush.msra.mxu0 0.0
    %93 = vmatpush.msra.mxu0 0.0
    %94 = vmatpush.msra.mxu0 %v42
    %95 = vmatmul.f32.gmra.mxu0 %v57
    %v96 = vpop.f32.mrf.mxu0
    %v97 = vadd.f32 %v48, %v96
    %98 = vdwg.mxu0
    %99 = vmatpush.msra.mxu0 0.0
    %100 = vmatpush.msra.mxu0 0.0
    %101 = vmatpush.msra.mxu0 0.0
    %102 = vmatpush.msra.mxu0 0.0
    %103 = vmatpush.msra.mxu0 0.0
    %104 = vmatpush.msra.mxu0 0.0
    %105 = vmatpush.msra.mxu0 0.0
    %106 = vmatpush.msra.mxu0 0.0
    %107 = vmatpush.msra.mxu0 0.0
    %108 = vmatpush.msra.mxu0 0.0
    %109 = vmatpush.msra.mxu0 0.0
    %110 = vmatpush.msra.mxu0 0.0
    %111 = vmatpush.msra.mxu0 0.0
    %112 = vmatpush.msra.mxu0 0.0
    %113 = vmatpush.msra.mxu0 0.0
    %114 = vmatpush.msra.mxu0 %v43
    %115 = vmatmul.f32.gmra.mxu0 %v57
    %v116 = vpop.f32.mrf.mxu0
    %v117 = vadd.f32 %v49, %v116
    %118 = vdwg.mxu0
    %119 = vmatpush.msra.mxu0 0.0
    %120 = vmatpush.msra.mxu0 0.0
    %121 = vmatpush.msra.mxu0 0.0
    %122 = vmatpush.msra.mxu0 0.0
    %123 = vmatpush.msra.mxu0 0.0
    %124 = vmatpush.msra.mxu0 0.0
    %125 = vmatpush.msra.mxu0 0.0
    %126 = vmatpush.msra.mxu0 0.0
    %127 = vmatpush.msra.mxu0 0.0
    %128 = vmatpush.msra.mxu0 0.0
    %129 = vmatpush.msra.mxu0 0.0
    %130 = vmatpush.msra.mxu0 0.0
    %131 = vmatpush.msra.mxu0 0.0
    %132 = vmatpush.msra.mxu0 0.0
    %133 = vmatpush.msra.mxu0 0.0
    %134 = vmatpush.msra.mxu0 %v44
    %135 = vmatmul.f32.gmra.mxu0 %v57
    %v136 = vpop.f32.mrf.mxu0
    %v137 = vadd.f32 %v50, %v136
    %138 = vdwg.mxu0
    %v139 = vld [vmem:[#allocation2] sm:$0xff]
    %v140 = vld [vmem:[#allocation2 + $0x8] sm:$0xff]
    %v141 = vld [vmem:[#allocation2 + $0x10] sm:$0xff]
    %v142 = vld [vmem:[#allocation2 + $0x18] sm:$0xff]
    %v143 = vld [vmem:[#allocation2 + $0x20] sm:$0xff]
    %v144 = vld [vmem:[#allocation2 + $0x28] sm:$0xff]
    %v145 = vld [vmem:[#allocation2 + $0x30] sm:$0xff]
    %v146 = vld [vmem:[#allocation2 + $0x38] sm:$0xff]
    %v147 = vld [vmem:[#allocation2 + $0x40] sm:$0xff]
    %v148 = vld [vmem:[#allocation2 + $0x48] sm:$0xff]
    %v149 = vld [vmem:[#allocation2 + $0x50] sm:$0xff]
    %v150 = vld [vmem:[#allocation2 + $0x58] sm:$0xff]
    %v151 = vld [vmem:[#allocation2 + $0x60] sm:$0xff]
    %v152 = vld [vmem:[#allocation2 + $0x68] sm:$0xff]
    %v153 = vld [vmem:[#allocation2 + $0x70] sm:$0xff]
    %v154 = vld [vmem:[#allocation2 + $0x78] sm:$0xff]
    %v155 = vld [vmem:[#allocation2 + $0x80] sm:$0xff]
    %v156 = vld [vmem:[#allocation2 + $0x88] sm:$0xff]
    %v157 = vld [vmem:[#allocation2 + $0x90] sm:$0xff]
    %v158 = vld [vmem:[#allocation2 + $0x98] sm:$0xff]
    %v159 = vld [vmem:[#allocation2 + $0xa0] sm:$0xff]
    %v160 = vld [vmem:[#allocation2 + $0xa8] sm:$0xff]
    %v161 = vld [vmem:[#allocation2 + $0xb0] sm:$0xff]
    %v162 = vld [vmem:[#allocation2 + $0xb8] sm:$0xff]
    %v163 = vld [vmem:[#allocation2 + $0xc0] sm:$0xff]
    %v164 = vld [vmem:[#allocation2 + $0xc8] sm:$0xff]
    %v165 = vld [vmem:[#allocation2 + $0xd0] sm:$0xff]
    %v166 = vld [vmem:[#allocation2 + $0xd8] sm:$0xff]
    %v167 = vld [vmem:[#allocation2 + $0xe0] sm:$0xff]
    %v168 = vld [vmem:[#allocation2 + $0xe8] sm:$0xff]
    %v169 = vld [vmem:[#allocation2 + $0xf0] sm:$0xff]
    %v170 = vld [vmem:[#allocation2 + $0xf8] sm:$0xff]
    %v171 = vld [vmem:[#allocation2 + $0x100] sm:$0xff]
    %v172 = vld [vmem:[#allocation2 + $0x108] sm:$0xff]
    %v173 = vld [vmem:[#allocation2 + $0x110] sm:$0xff]
    %v174 = vld [vmem:[#allocation2 + $0x118] sm:$0xff]
    %v175 = vld [vmem:[#allocation2 + $0x120] sm:$0xff]
    %v176 = vld [vmem:[#allocation2 + $0x128] sm:$0xff]
    %v177 = vld [vmem:[#allocation2 + $0x130] sm:$0xff]
    %v178 = vld [vmem:[#allocation2 + $0x138] sm:$0xff]
    %v179 = vld [vmem:[#allocation2 + $0x140] sm:$0xff]
    %v180 = vld [vmem:[#allocation2 + $0x148] sm:$0xff]
    %v181 = vld [vmem:[#allocation2 + $0x150] sm:$0xff]
    %v182 = vld [vmem:[#allocation2 + $0x158] sm:$0xff]
    %v183 = vld [vmem:[#allocation2 + $0x160] sm:$0xff]
    %v184 = vld [vmem:[#allocation2 + $0x168] sm:$0xff]
    %v185 = vld [vmem:[#allocation2 + $0x170] sm:$0xff]
    %v186 = vld [vmem:[#allocation2 + $0x178] sm:$0xff]
    %v187 = vld [vmem:[#allocation2 + $0x180] sm:$0xff]
    %v188 = vld [vmem:[#allocation2 + $0x188] sm:$0xff]
    %v189 = vld [vmem:[#allocation2 + $0x190] sm:$0xff]
    %v190 = vld [vmem:[#allocation2 + $0x198] sm:$0xff]
    %v191 = vld [vmem:[#allocation2 + $0x1a0] sm:$0xff]
    %v192 = vld [vmem:[#allocation2 + $0x1a8] sm:$0xff]
    %v193 = vld [vmem:[#allocation2 + $0x1b0] sm:$0xff]
    %v194 = vld [vmem:[#allocation2 + $0x1b8] sm:$0xff]
    %v195 = vld [vmem:[#allocation2 + $0x1c0] sm:$0xff]
    %v196 = vld [vmem:[#allocation2 + $0x1c8] sm:$0xff]
    %v197 = vld [vmem:[#allocation2 + $0x1d0] sm:$0xff]
    %v198 = vld [vmem:[#allocation2 + $0x1d8] sm:$0xff]
    %v199 = vld [vmem:[#allocation2 + $0x1e0] sm:$0xff]
    %v200 = vld [vmem:[#allocation2 + $0x1e8] sm:$0xff]
    %v201 = vld [vmem:[#allocation2 + $0x1f0] sm:$0xff]
    %v202 = vld [vmem:[#allocation2 + $0x1f8] sm:$0xff]
    %203 = vmatpush.msra.mxu0 %v199
    %204 = vmatpush.msra.mxu0 %v195
    %205 = vmatpush.msra.mxu0 %v191
    %206 = vmatpush.msra.mxu0 %v187
    %207 = vmatpush.msra.mxu0 %v183
    %208 = vmatpush.msra.mxu0 %v179
    %209 = vmatpush.msra.mxu0 %v175
    %210 = vmatpush.msra.mxu0 %v171
    %211 = vmatpush.msra.mxu0 %v167
    %212 = vmatpush.msra.mxu0 %v163
    %213 = vmatpush.msra.mxu0 %v159
    %214 = vmatpush.msra.mxu0 %v155
    %215 = vmatpush.msra.mxu0 %v151
    %216 = vmatpush.msra.mxu0 %v147
    %217 = vmatpush.msra.mxu0 %v143
    %218 = vmatpush.msra.mxu0 %v139
    %219 = vmatmul.f32.gmra.mxu0 0.0
    %v220 = vpop.f32.mrf.mxu0
    %v221 = vadd.f32 0.0, %v220
    %222 = vdwg.mxu0
    %223 = vmatpush.msra.mxu0 %v200
    %224 = vmatpush.msra.mxu0 %v196
    %225 = vmatpush.msra.mxu0 %v192
    %226 = vmatpush.msra.mxu0 %v188
    %227 = vmatpush.msra.mxu0 %v184
    %228 = vmatpush.msra.mxu0 %v180
    %229 = vmatpush.msra.mxu0 %v176
    %230 = vmatpush.msra.mxu0 %v172
    %231 = vmatpush.msra.mxu0 %v168
    %232 = vmatpush.msra.mxu0 %v164
    %233 = vmatpush.msra.mxu0 %v160
    %234 = vmatpush.msra.mxu0 %v156
    %235 = vmatpush.msra.mxu0 %v152
    %236 = vmatpush.msra.mxu0 %v148
    %237 = vmatpush.msra.mxu0 %v144
    %238 = vmatpush.msra.mxu0 %v140
    %239 = vmatmul.f32.gmra.mxu0 0.0
    %v240 = vpop.f32.mrf.mxu0
    %v241 = vadd.f32 0.0, %v240
    %242 = vdwg.mxu0
    %243 = vmatpush.msra.mxu0 %v201
    %244 = vmatpush.msra.mxu0 %v197
    %245 = vmatpush.msra.mxu0 %v193
    %246 = vmatpush.msra.mxu0 %v189
    %247 = vmatpush.msra.mxu0 %v185
    %248 = vmatpush.msra.mxu0 %v181
    %249 = vmatpush.msra.mxu0 %v177
    %250 = vmatpush.msra.mxu0 %v173
    %251 = vmatpush.msra.mxu0 %v169
    %252 = vmatpush.msra.mxu0 %v165
    %253 = vmatpush.msra.mxu0 %v161
    %254 = vmatpush.msra.mxu0 %v157
    %255 = vmatpush.msra.mxu0 %v153
    %256 = vmatpush.msra.mxu0 %v149
    %257 = vmatpush.msra.mxu0 %v145
    %258 = vmatpush.msra.mxu0 %v141
    %259 = vmatmul.f32.gmra.mxu0 0.0
    %v260 = vpop.f32.mrf.mxu0
    %v261 = vadd.f32 0.0, %v260
    %262 = vdwg.mxu0
    %263 = vmatpush.msra.mxu0 %v202
    %264 = vmatpush.msra.mxu0 %v198
    %265 = vmatpush.msra.mxu0 %v194
    %266 = vmatpush.msra.mxu0 %v190
    %267 = vmatpush.msra.mxu0 %v186
    %268 = vmatpush.msra.mxu0 %v182
    %269 = vmatpush.msra.mxu0 %v178
    %270 = vmatpush.msra.mxu0 %v174
    %271 = vmatpush.msra.mxu0 %v170
    %272 = vmatpush.msra.mxu0 %v166
    %273 = vmatpush.msra.mxu0 %v162
    %274 = vmatpush.msra.mxu0 %v158
    %275 = vmatpush.msra.mxu0 %v154
    %276 = vmatpush.msra.mxu0 %v150
    %277 = vmatpush.msra.mxu0 %v146
    %278 = vmatpush.msra.mxu0 %v142
    %279 = vmatmul.f32.gmra.mxu0 0.0
    %v280 = vpop.f32.mrf.mxu0
    %v281 = vadd.f32 0.0, %v280
    %282 = vdwg.mxu0
    %v283 = vadd.f32 %v77, %v221
    %v284 = vadd.f32 %v97, %v241
    %v285 = vadd.f32 %v117, %v261
    %v286 = vadd.f32 %v137, %v281
    %v287 = vxor.u32 %v283, 2147483648
    %v288 = vxor.u32 %v284, 2147483648
    %v289 = vxor.u32 %v286, 2147483648
    %v290 = vmul.f32 %v287, 1.442695
    %v291 = vpow.pop %v290
    %v292 = vmul.f32 %v288, 1.442695
    %v293 = vpow.pop %v292
    %v294 = vmul.f32 %v289, 1.442695
    %v295 = vpow.pop %v294
    %v296 = vadd.f32 %v291, 1.0
    %v297 = vadd.f32 %v293, 1.0
    %v298 = vadd.f32 %v295, 1.0
    %v299 = vrcp.pop %v296
    %v300 = vmul.f32 %v296, %v299
    %v301 = vsub.f32 1.0, %v300
    %v302 = vmul.f32 %v299, %v301
    %v303 = vadd.f32 %v299, %v302
    %vm304 = vweird.f32 %v296
    %vm305 = vweird.f32 %v299
    %vm306 = vmor %vm304, %vm305
    %v307 = vsel %vm306, %v299, %v303
    %v308 = vand.u32 2147483647, %v296
    %vm309 = vcmp.eq.f32.partialorder %v308, 8.507059e+37
    %v310 = vand.u32 %v296, 2147483648
    %v311 = vor.u32 1.1754944e-38, %v310
    %v312 = vsel %vm309, %v311, %v307
    %v313 = vmul.f32 1.0, %v312
    %v314 = vrcp.pop %v297
    %v315 = vmul.f32 %v297, %v314
    %v316 = vsub.f32 1.0, %v315
    %v317 = vmul.f32 %v314, %v316
    %v318 = vadd.f32 %v314, %v317
    %vm319 = vweird.f32 %v297
    %vm320 = vweird.f32 %v314
    %vm321 = vmor %vm319, %vm320
    %v322 = vsel %vm321, %v314, %v318
    %v323 = vand.u32 2147483647, %v297
    %vm324 = vcmp.eq.f32.partialorder %v323, 8.507059e+37
    %v325 = vand.u32 %v297, 2147483648
    %v326 = vor.u32 1.1754944e-38, %v325
    %v327 = vsel %vm324, %v326, %v322
    %v328 = vmul.f32 1.0, %v327
    %v329 = vrcp.pop %v298
    %v330 = vmul.f32 %v298, %v329
    %v331 = vsub.f32 1.0, %v330
    %v332 = vmul.f32 %v329, %v331
    %v333 = vadd.f32 %v329, %v332
    %vm334 = vweird.f32 %v298
    %vm335 = vweird.f32 %v329
    %vm336 = vmor %vm334, %vm335
    %v337 = vsel %vm336, %v329, %v333
    %v338 = vand.u32 2147483647, %v298
    %vm339 = vcmp.eq.f32.partialorder %v338, 8.507059e+37
    %v340 = vand.u32 %v298, 2147483648
    %v341 = vor.u32 1.1754944e-38, %v340
    %v342 = vsel %vm339, %v341, %v337
    %v343 = vmul.f32 1.0, %v342
    %v344 = vtanh.pop %v285
    %v345 = vmul.f32 %v328, 0.0
    %v346 = vmul.f32 %v313, %v344
    %v347 = vadd.f32 %v345, %v346
    %v348 = vtanh.pop %v347
    %v349 = vmul.f32 %v343, %v348
    %350 = vmatpush.msra.mxu0 %v199
    %351 = vmatpush.msra.mxu0 %v195
    %352 = vmatpush.msra.mxu0 %v191
    %353 = vmatpush.msra.mxu0 %v187
    %354 = vmatpush.msra.mxu0 %v183
    %355 = vmatpush.msra.mxu0 %v179
    %356 = vmatpush.msra.mxu0 %v175
    %357 = vmatpush.msra.mxu0 %v171
    %358 = vmatpush.msra.mxu0 %v167
    %359 = vmatpush.msra.mxu0 %v163
    %360 = vmatpush.msra.mxu0 %v159
    %361 = vmatpush.msra.mxu0 %v155
    %362 = vmatpush.msra.mxu0 %v151
    %363 = vmatpush.msra.mxu0 %v147
    %364 = vmatpush.msra.mxu0 %v143
    %365 = vmatpush.msra.mxu0 %v139
    %366 = vmatmul.f32.gmra.mxu0 %v349
    %v367 = vpop.f32.mrf.mxu0
    %v368 = vadd.f32 0.0, %v367
    %369 = vdwg.mxu0
    %370 = vmatpush.msra.mxu0 %v200
    %371 = vmatpush.msra.mxu0 %v196
    %372 = vmatpush.msra.mxu0 %v192
    %373 = vmatpush.msra.mxu0 %v188
    %374 = vmatpush.msra.mxu0 %v184
    %375 = vmatpush.msra.mxu0 %v180
    %376 = vmatpush.msra.mxu0 %v176
    %377 = vmatpush.msra.mxu0 %v172
    %378 = vmatpush.msra.mxu0 %v168
    %379 = vmatpush.msra.mxu0 %v164
    %380 = vmatpush.msra.mxu0 %v160
    %381 = vmatpush.msra.mxu0 %v156
    %382 = vmatpush.msra.mxu0 %v152
    %383 = vmatpush.msra.mxu0 %v148
    %384 = vmatpush.msra.mxu0 %v144
    %385 = vmatpush.msra.mxu0 %v140
    %386 = vmatmul.f32.gmra.mxu0 %v349
    %v387 = vpop.f32.mrf.mxu0
    %v388 = vadd.f32 0.0, %v387
    %389 = vdwg.mxu0
    %390 = vmatpush.msra.mxu0 %v201
    %391 = vmatpush.msra.mxu0 %v197
    %392 = vmatpush.msra.mxu0 %v193
    %393 = vmatpush.msra.mxu0 %v189
    %394 = vmatpush.msra.mxu0 %v185
    %395 = vmatpush.msra.mxu0 %v181
    %396 = vmatpush.msra.mxu0 %v177
    %397 = vmatpush.msra.mxu0 %v173
    %398 = vmatpush.msra.mxu0 %v169
    %399 = vmatpush.msra.mxu0 %v165
    %400 = vmatpush.msra.mxu0 %v161
    %401 = vmatpush.msra.mxu0 %v157
    %402 = vmatpush.msra.mxu0 %v153
    %403 = vmatpush.msra.mxu0 %v149
    %404 = vmatpush.msra.mxu0 %v145
    %405 = vmatpush.msra.mxu0 %v141
    %406 = vmatmul.f32.gmra.mxu0 %v349
    %v407 = vpop.f32.mrf.mxu0
    %v408 = vadd.f32 0.0, %v407
    %409 = vdwg.mxu0
    %410 = vmatpush.msra.mxu0 %v202
    %411 = vmatpush.msra.mxu0 %v198
    %412 = vmatpush.msra.mxu0 %v194
    %413 = vmatpush.msra.mxu0 %v190
    %414 = vmatpush.msra.mxu0 %v186
    %415 = vmatpush.msra.mxu0 %v182
    %416 = vmatpush.msra.mxu0 %v178
    %417 = vmatpush.msra.mxu0 %v174
    %418 = vmatpush.msra.mxu0 %v170
    %419 = vmatpush.msra.mxu0 %v166
    %420 = vmatpush.msra.mxu0 %v162
    %421 = vmatpush.msra.mxu0 %v158
    %422 = vmatpush.msra.mxu0 %v154
    %423 = vmatpush.msra.mxu0 %v150
    %424 = vmatpush.msra.mxu0 %v146
    %425 = vmatpush.msra.mxu0 %v142
    %426 = vmatmul.f32.gmra.mxu0 %v349
    %v427 = vpop.f32.mrf.mxu0
    %v428 = vadd.f32 0.0, %v427
    %429 = vdwg.mxu0
    %v434 = vrot.slane %v368, 7
    %v435 = vrot.slane %v388, 7
    %v436 = vrot.slane %v408, 7
    %v437 = vrot.slane %v428, 7
    %v442 = vadd.f32 %v77, %v434
    %v443 = vadd.f32 %v97, %v435
    %v444 = vadd.f32 %v117, %v436
    %v445 = vadd.f32 %v137, %v437
    %v446 = vxor.u32 %v442, 2147483648
    %v447 = vxor.u32 %v443, 2147483648
    %v448 = vxor.u32 %v445, 2147483648
    %v449 = vmul.f32 %v446, 1.442695
    %v450 = vpow.pop %v449
    %v451 = vmul.f32 %v447, 1.442695
    %v452 = vpow.pop %v451
    %v453 = vmul.f32 %v448, 1.442695
    %v454 = vpow.pop %v453
    %v455 = vadd.f32 %v450, 1.0
    %v456 = vadd.f32 %v452, 1.0
    %v457 = vadd.f32 %v454, 1.0
    %v458 = vrcp.pop %v455
    %v459 = vmul.f32 %v455, %v458
    %v460 = vsub.f32 1.0, %v459
    %v461 = vmul.f32 %v458, %v460
    %v462 = vadd.f32 %v458, %v461
    %vm463 = vweird.f32 %v455
    %vm464 = vweird.f32 %v458
    %vm465 = vmor %vm463, %vm464
    %v466 = vsel %vm465, %v458, %v462
    %v467 = vand.u32 2147483647, %v455
    %vm468 = vcmp.eq.f32.partialorder %v467, 8.507059e+37
    %v469 = vand.u32 %v455, 2147483648
    %v470 = vor.u32 1.1754944e-38, %v469
    %v471 = vsel %vm468, %v470, %v466
    %v472 = vmul.f32 1.0, %v471
    %v473 = vrcp.pop %v456
    %v474 = vmul.f32 %v456, %v473
    %v475 = vsub.f32 1.0, %v474
    %v476 = vmul.f32 %v473, %v475
    %v477 = vadd.f32 %v473, %v476
    %vm478 = vweird.f32 %v456
    %vm479 = vweird.f32 %v473
    %vm480 = vmor %vm478, %vm479
    %v481 = vsel %vm480, %v473, %v477
    %v482 = vand.u32 2147483647, %v456
    %vm483 = vcmp.eq.f32.partialorder %v482, 8.507059e+37
    %v484 = vand.u32 %v456, 2147483648
    %v485 = vor.u32 1.1754944e-38, %v484
    %v486 = vsel %vm483, %v485, %v481
    %v487 = vmul.f32 1.0, %v486
    %v488 = vrcp.pop %v457
    %v489 = vmul.f32 %v457, %v488
    %v490 = vsub.f32 1.0, %v489
    %v491 = vmul.f32 %v488, %v490
    %v492 = vadd.f32 %v488, %v491
    %vm493 = vweird.f32 %v457
    %vm494 = vweird.f32 %v488
    %vm495 = vmor %vm493, %vm494
    %v496 = vsel %vm495, %v488, %v492
    %v497 = vand.u32 2147483647, %v457
    %vm498 = vcmp.eq.f32.partialorder %v497, 8.507059e+37
    %v499 = vand.u32 %v457, 2147483648
    %v500 = vor.u32 1.1754944e-38, %v499
    %v501 = vsel %vm498, %v500, %v496
    %v502 = vmul.f32 1.0, %v501
    %v503 = vtanh.pop %v444
    %v505 = vrot.slane %v347, 7
    %v507 = vmul.f32 %v487, %v505
    %v508 = vmul.f32 %v472, %v503
    %v509 = vadd.f32 %v507, %v508
    %v510 = vtanh.pop %v509
    %v511 = vmul.f32 %v502, %v510
    %v513 = vrot.slane %v511, 1
    %515 = vmatpush.msra.mxu0 %v199
    %516 = vmatpush.msra.mxu0 %v195
    %517 = vmatpush.msra.mxu0 %v191
    %518 = vmatpush.msra.mxu0 %v187
    %519 = vmatpush.msra.mxu0 %v183
    %520 = vmatpush.msra.mxu0 %v179
    %521 = vmatpush.msra.mxu0 %v175
    %522 = vmatpush.msra.mxu0 %v171
    %523 = vmatpush.msra.mxu0 %v167
    %524 = vmatpush.msra.mxu0 %v163
    %525 = vmatpush.msra.mxu0 %v159
    %526 = vmatpush.msra.mxu0 %v155
    %527 = vmatpush.msra.mxu0 %v151
    %528 = vmatpush.msra.mxu0 %v147
    %529 = vmatpush.msra.mxu0 %v143
    %530 = vmatpush.msra.mxu0 %v139
    %531 = vmatmul.f32.gmra.mxu0 %v513
    %v532 = vpop.f32.mrf.mxu0
    %v533 = vadd.f32 0.0, %v532
    %534 = vdwg.mxu0
    %535 = vmatpush.msra.mxu0 %v200
    %536 = vmatpush.msra.mxu0 %v196
    %537 = vmatpush.msra.mxu0 %v192
    %538 = vmatpush.msra.mxu0 %v188
    %539 = vmatpush.msra.mxu0 %v184
    %540 = vmatpush.msra.mxu0 %v180
    %541 = vmatpush.msra.mxu0 %v176
    %542 = vmatpush.msra.mxu0 %v172
    %543 = vmatpush.msra.mxu0 %v168
    %544 = vmatpush.msra.mxu0 %v164
    %545 = vmatpush.msra.mxu0 %v160
    %546 = vmatpush.msra.mxu0 %v156
    %547 = vmatpush.msra.mxu0 %v152
    %548 = vmatpush.msra.mxu0 %v148
    %549 = vmatpush.msra.mxu0 %v144
    %550 = vmatpush.msra.mxu0 %v140
    %551 = vmatmul.f32.gmra.mxu0 %v513
    %v552 = vpop.f32.mrf.mxu0
    %v553 = vadd.f32 0.0, %v552
    %554 = vdwg.mxu0
    %555 = vmatpush.msra.mxu0 %v201
    %556 = vmatpush.msra.mxu0 %v197
    %557 = vmatpush.msra.mxu0 %v193
    %558 = vmatpush.msra.mxu0 %v189
    %559 = vmatpush.msra.mxu0 %v185
    %560 = vmatpush.msra.mxu0 %v181
    %561 = vmatpush.msra.mxu0 %v177
    %562 = vmatpush.msra.mxu0 %v173
    %563 = vmatpush.msra.mxu0 %v169
    %564 = vmatpush.msra.mxu0 %v165
    %565 = vmatpush.msra.mxu0 %v161
    %566 = vmatpush.msra.mxu0 %v157
    %567 = vmatpush.msra.mxu0 %v153
    %568 = vmatpush.msra.mxu0 %v149
    %569 = vmatpush.msra.mxu0 %v145
    %570 = vmatpush.msra.mxu0 %v141
    %571 = vmatmul.f32.gmra.mxu0 %v513
    %v572 = vpop.f32.mrf.mxu0
    %v573 = vadd.f32 0.0, %v572
    %574 = vdwg.mxu0
    %575 = vmatpush.msra.mxu0 %v202
    %576 = vmatpush.msra.mxu0 %v198
    %577 = vmatpush.msra.mxu0 %v194
    %578 = vmatpush.msra.mxu0 %v190
    %579 = vmatpush.msra.mxu0 %v186
    %580 = vmatpush.msra.mxu0 %v182
    %581 = vmatpush.msra.mxu0 %v178
    %582 = vmatpush.msra.mxu0 %v174
    %583 = vmatpush.msra.mxu0 %v170
    %584 = vmatpush.msra.mxu0 %v166
    %585 = vmatpush.msra.mxu0 %v162
    %586 = vmatpush.msra.mxu0 %v158
    %587 = vmatpush.msra.mxu0 %v154
    %588 = vmatpush.msra.mxu0 %v150
    %589 = vmatpush.msra.mxu0 %v146
    %590 = vmatpush.msra.mxu0 %v142
    %591 = vmatmul.f32.gmra.mxu0 %v513
    %v592 = vpop.f32.mrf.mxu0
    %v593 = vadd.f32 0.0, %v592
    %594 = vdwg.mxu0
    %v599 = vrot.slane %v533, 6
    %v600 = vrot.slane %v553, 6
    %v601 = vrot.slane %v573, 6
    %v602 = vrot.slane %v593, 6
    %v607 = vadd.f32 %v77, %v599
    %v608 = vadd.f32 %v97, %v600
    %v609 = vadd.f32 %v117, %v601
    %v610 = vadd.f32 %v137, %v602
    %v611 = vxor.u32 %v607, 2147483648
    %v612 = vxor.u32 %v608, 2147483648
    %v613 = vxor.u32 %v610, 2147483648
    %v614 = vmul.f32 %v611, 1.442695
    %v615 = vpow.pop %v614
    %v616 = vmul.f32 %v612, 1.442695
    %v617 = vpow.pop %v616
    %v618 = vmul.f32 %v613, 1.442695
    %v619 = vpow.pop %v618
    %v620 = vadd.f32 %v615, 1.0
    %v621 = vadd.f32 %v617, 1.0
    %v622 = vadd.f32 %v619, 1.0
    %v623 = vrcp.pop %v620
    %v624 = vmul.f32 %v620, %v623
    %v625 = vsub.f32 1.0, %v624
    %v626 = vmul.f32 %v623, %v625
    %v627 = vadd.f32 %v623, %v626
    %vm628 = vweird.f32 %v620
    %vm629 = vweird.f32 %v623
    %vm630 = vmor %vm628, %vm629
    %v631 = vsel %vm630, %v623, %v627
    %v632 = vand.u32 2147483647, %v620
    %vm633 = vcmp.eq.f32.partialorder %v632, 8.507059e+37
    %v634 = vand.u32 %v620, 2147483648
    %v635 = vor.u32 1.1754944e-38, %v634
    %v636 = vsel %vm633, %v635, %v631
    %v637 = vmul.f32 1.0, %v636
    %v638 = vrcp.pop %v621
    %v639 = vmul.f32 %v621, %v638
    %v640 = vsub.f32 1.0, %v639
    %v641 = vmul.f32 %v638, %v640
    %v642 = vadd.f32 %v638, %v641
    %vm643 = vweird.f32 %v621
    %vm644 = vweird.f32 %v638
    %vm645 = vmor %vm643, %vm644
    %v646 = vsel %vm645, %v638, %v642
    %v647 = vand.u32 2147483647, %v621
    %vm648 = vcmp.eq.f32.partialorder %v647, 8.507059e+37
    %v649 = vand.u32 %v621, 2147483648
    %v650 = vor.u32 1.1754944e-38, %v649
    %v651 = vsel %vm648, %v650, %v646
    %v652 = vmul.f32 1.0, %v651
    %v653 = vrcp.pop %v622
    %v654 = vmul.f32 %v622, %v653
    %v655 = vsub.f32 1.0, %v654
    %v656 = vmul.f32 %v653, %v655
    %v657 = vadd.f32 %v653, %v656
    %vm658 = vweird.f32 %v622
    %vm659 = vweird.f32 %v653
    %vm660 = vmor %vm658, %vm659
    %v661 = vsel %vm660, %v653, %v657
    %v662 = vand.u32 2147483647, %v622
    %vm663 = vcmp.eq.f32.partialorder %v662, 8.507059e+37
    %v664 = vand.u32 %v622, 2147483648
    %v665 = vor.u32 1.1754944e-38, %v664
    %v666 = vsel %vm663, %v665, %v661
    %v667 = vmul.f32 1.0, %v666
    %v668 = vtanh.pop %v609
    %v670 = vrot.slane %v509, 7
    %v672 = vmul.f32 %v652, %v670
    %v673 = vmul.f32 %v637, %v668
    %v674 = vadd.f32 %v672, %v673
    %v675 = vtanh.pop %v674
    %v676 = vmul.f32 %v667, %v675
    %v678 = vrot.slane %v676, 2
    %680 = vmatpush.msra.mxu0 %v199
    %681 = vmatpush.msra.mxu0 %v195
    %682 = vmatpush.msra.mxu0 %v191
    %683 = vmatpush.msra.mxu0 %v187
    %684 = vmatpush.msra.mxu0 %v183
    %685 = vmatpush.msra.mxu0 %v179
    %686 = vmatpush.msra.mxu0 %v175
    %687 = vmatpush.msra.mxu0 %v171
    %688 = vmatpush.msra.mxu0 %v167
    %689 = vmatpush.msra.mxu0 %v163
    %690 = vmatpush.msra.mxu0 %v159
    %691 = vmatpush.msra.mxu0 %v155
    %692 = vmatpush.msra.mxu0 %v151
    %693 = vmatpush.msra.mxu0 %v147
    %694 = vmatpush.msra.mxu0 %v143
    %695 = vmatpush.msra.mxu0 %v139
    %696 = vmatmul.f32.gmra.mxu0 %v678
    %v697 = vpop.f32.mrf.mxu0
    %v698 = vadd.f32 0.0, %v697
    %699 = vdwg.mxu0
    %700 = vmatpush.msra.mxu0 %v200
    %701 = vmatpush.msra.mxu0 %v196
    %702 = vmatpush.msra.mxu0 %v192
    %703 = vmatpush.msra.mxu0 %v188
    %704 = vmatpush.msra.mxu0 %v184
    %705 = vmatpush.msra.mxu0 %v180
    %706 = vmatpush.msra.mxu0 %v176
    %707 = vmatpush.msra.mxu0 %v172
    %708 = vmatpush.msra.mxu0 %v168
    %709 = vmatpush.msra.mxu0 %v164
    %710 = vmatpush.msra.mxu0 %v160
    %711 = vmatpush.msra.mxu0 %v156
    %712 = vmatpush.msra.mxu0 %v152
    %713 = vmatpush.msra.mxu0 %v148
    %714 = vmatpush.msra.mxu0 %v144
    %715 = vmatpush.msra.mxu0 %v140
    %716 = vmatmul.f32.gmra.mxu0 %v678
    %v717 = vpop.f32.mrf.mxu0
    %v718 = vadd.f32 0.0, %v717
    %719 = vdwg.mxu0
    %720 = vmatpush.msra.mxu0 %v201
    %721 = vmatpush.msra.mxu0 %v197
    %722 = vmatpush.msra.mxu0 %v193
    %723 = vmatpush.msra.mxu0 %v189
    %724 = vmatpush.msra.mxu0 %v185
    %725 = vmatpush.msra.mxu0 %v181
    %726 = vmatpush.msra.mxu0 %v177
    %727 = vmatpush.msra.mxu0 %v173
    %728 = vmatpush.msra.mxu0 %v169
    %729 = vmatpush.msra.mxu0 %v165
    %730 = vmatpush.msra.mxu0 %v161
    %731 = vmatpush.msra.mxu0 %v157
    %732 = vmatpush.msra.mxu0 %v153
    %733 = vmatpush.msra.mxu0 %v149
    %734 = vmatpush.msra.mxu0 %v145
    %735 = vmatpush.msra.mxu0 %v141
    %736 = vmatmul.f32.gmra.mxu0 %v678
    %v737 = vpop.f32.mrf.mxu0
    %v738 = vadd.f32 0.0, %v737
    %739 = vdwg.mxu0
    %740 = vmatpush.msra.mxu0 %v202
    %741 = vmatpush.msra.mxu0 %v198
    %742 = vmatpush.msra.mxu0 %v194
    %743 = vmatpush.msra.mxu0 %v190
    %744 = vmatpush.msra.mxu0 %v186
    %745 = vmatpush.msra.mxu0 %v182
    %746 = vmatpush.msra.mxu0 %v178
    %747 = vmatpush.msra.mxu0 %v174
    %748 = vmatpush.msra.mxu0 %v170
    %749 = vmatpush.msra.mxu0 %v166
    %750 = vmatpush.msra.mxu0 %v162
    %751 = vmatpush.msra.mxu0 %v158
    %752 = vmatpush.msra.mxu0 %v154
    %753 = vmatpush.msra.mxu0 %v150
    %754 = vmatpush.msra.mxu0 %v146
    %755 = vmatpush.msra.mxu0 %v142
    %756 = vmatmul.f32.gmra.mxu0 %v678
    %v757 = vpop.f32.mrf.mxu0
    %v758 = vadd.f32 0.0, %v757
    %759 = vdwg.mxu0
    %v764 = vrot.slane %v698, 5
    %v765 = vrot.slane %v718, 5
    %v766 = vrot.slane %v738, 5
    %v767 = vrot.slane %v758, 5
    %v772 = vadd.f32 %v77, %v764
    %v773 = vadd.f32 %v97, %v765
    %v774 = vadd.f32 %v117, %v766
    %v775 = vadd.f32 %v137, %v767
    %v776 = vxor.u32 %v772, 2147483648
    %v777 = vxor.u32 %v773, 2147483648
    %v778 = vxor.u32 %v775, 2147483648
    %v779 = vmul.f32 %v776, 1.442695
    %v780 = vpow.pop %v779
    %v781 = vmul.f32 %v777, 1.442695
    %v782 = vpow.pop %v781
    %v783 = vmul.f32 %v778, 1.442695
    %v784 = vpow.pop %v783
    %v785 = vadd.f32 %v780, 1.0
    %v786 = vadd.f32 %v782, 1.0
    %v787 = vadd.f32 %v784, 1.0
    %v788 = vrcp.pop %v785
    %v789 = vmul.f32 %v785, %v788
    %v790 = vsub.f32 1.0, %v789
    %v791 = vmul.f32 %v788, %v790
    %v792 = vadd.f32 %v788, %v791
    %vm793 = vweird.f32 %v785
    %vm794 = vweird.f32 %v788
    %vm795 = vmor %vm793, %vm794
    %v796 = vsel %vm795, %v788, %v792
    %v797 = vand.u32 2147483647, %v785
    %vm798 = vcmp.eq.f32.partialorder %v797, 8.507059e+37
    %v799 = vand.u32 %v785, 2147483648
    %v800 = vor.u32 1.1754944e-38, %v799
    %v801 = vsel %vm798, %v800, %v796
    %v802 = vmul.f32 1.0, %v801
    %v803 = vrcp.pop %v786
    %v804 = vmul.f32 %v786, %v803
    %v805 = vsub.f32 1.0, %v804
    %v806 = vmul.f32 %v803, %v805
    %v807 = vadd.f32 %v803, %v806
    %vm808 = vweird.f32 %v786
    %vm809 = vweird.f32 %v803
    %vm810 = vmor %vm808, %vm809
    %v811 = vsel %vm810, %v803, %v807
    %v812 = vand.u32 2147483647, %v786
    %vm813 = vcmp.eq.f32.partialorder %v812, 8.507059e+37
    %v814 = vand.u32 %v786, 2147483648
    %v815 = vor.u32 1.1754944e-38, %v814
    %v816 = vsel %vm813, %v815, %v811
    %v817 = vmul.f32 1.0, %v816
    %v818 = vrcp.pop %v787
    %v819 = vmul.f32 %v787, %v818
    %v820 = vsub.f32 1.0, %v819
    %v821 = vmul.f32 %v818, %v820
    %v822 = vadd.f32 %v818, %v821
    %vm823 = vweird.f32 %v787
    %vm824 = vweird.f32 %v818
    %vm825 = vmor %vm823, %vm824
    %v826 = vsel %vm825, %v818, %v822
    %v827 = vand.u32 2147483647, %v787
    %vm828 = vcmp.eq.f32.partialorder %v827, 8.507059e+37
    %v829 = vand.u32 %v787, 2147483648
    %v830 = vor.u32 1.1754944e-38, %v829
    %v831 = vsel %vm828, %v830, %v826
    %v832 = vmul.f32 1.0, %v831
    %v833 = vtanh.pop %v774
    %v835 = vrot.slane %v674, 7
    %v837 = vmul.f32 %v817, %v835
    %v838 = vmul.f32 %v802, %v833
    %v839 = vadd.f32 %v837, %v838
    %v840 = vtanh.pop %v839
    %v841 = vmul.f32 %v832, %v840
    %v843 = vrot.slane %v841, 3
    %845 = vmatpush.msra.mxu0 %v199
    %846 = vmatpush.msra.mxu0 %v195
    %847 = vmatpush.msra.mxu0 %v191
    %848 = vmatpush.msra.mxu0 %v187
    %849 = vmatpush.msra.mxu0 %v183
    %850 = vmatpush.msra.mxu0 %v179
    %851 = vmatpush.msra.mxu0 %v175
    %852 = vmatpush.msra.mxu0 %v171
    %853 = vmatpush.msra.mxu0 %v167
    %854 = vmatpush.msra.mxu0 %v163
    %855 = vmatpush.msra.mxu0 %v159
    %856 = vmatpush.msra.mxu0 %v155
    %857 = vmatpush.msra.mxu0 %v151
    %858 = vmatpush.msra.mxu0 %v147
    %859 = vmatpush.msra.mxu0 %v143
    %860 = vmatpush.msra.mxu0 %v139
    %861 = vmatmul.f32.gmra.mxu0 %v843
    %v862 = vpop.f32.mrf.mxu0
    %v863 = vadd.f32 0.0, %v862
    %864 = vdwg.mxu0
    %865 = vmatpush.msra.mxu0 %v200
    %866 = vmatpush.msra.mxu0 %v196
    %867 = vmatpush.msra.mxu0 %v192
    %868 = vmatpush.msra.mxu0 %v188
    %869 = vmatpush.msra.mxu0 %v184
    %870 = vmatpush.msra.mxu0 %v180
    %871 = vmatpush.msra.mxu0 %v176
    %872 = vmatpush.msra.mxu0 %v172
    %873 = vmatpush.msra.mxu0 %v168
    %874 = vmatpush.msra.mxu0 %v164
    %875 = vmatpush.msra.mxu0 %v160
    %876 = vmatpush.msra.mxu0 %v156
    %877 = vmatpush.msra.mxu0 %v152
    %878 = vmatpush.msra.mxu0 %v148
    %879 = vmatpush.msra.mxu0 %v144
    %880 = vmatpush.msra.mxu0 %v140
    %881 = vmatmul.f32.gmra.mxu0 %v843
    %v882 = vpop.f32.mrf.mxu0
    %v883 = vadd.f32 0.0, %v882
    %884 = vdwg.mxu0
    %885 = vmatpush.msra.mxu0 %v201
    %886 = vmatpush.msra.mxu0 %v197
    %887 = vmatpush.msra.mxu0 %v193
    %888 = vmatpush.msra.mxu0 %v189
    %889 = vmatpush.msra.mxu0 %v185
    %890 = vmatpush.msra.mxu0 %v181
    %891 = vmatpush.msra.mxu0 %v177
    %892 = vmatpush.msra.mxu0 %v173
    %893 = vmatpush.msra.mxu0 %v169
    %894 = vmatpush.msra.mxu0 %v165
    %895 = vmatpush.msra.mxu0 %v161
    %896 = vmatpush.msra.mxu0 %v157
    %897 = vmatpush.msra.mxu0 %v153
    %898 = vmatpush.msra.mxu0 %v149
    %899 = vmatpush.msra.mxu0 %v145
    %900 = vmatpush.msra.mxu0 %v141
    %901 = vmatmul.f32.gmra.mxu0 %v843
    %v902 = vpop.f32.mrf.mxu0
    %v903 = vadd.f32 0.0, %v902
    %904 = vdwg.mxu0
    %905 = vmatpush.msra.mxu0 %v202
    %906 = vmatpush.msra.mxu0 %v198
    %907 = vmatpush.msra.mxu0 %v194
    %908 = vmatpush.msra.mxu0 %v190
    %909 = vmatpush.msra.mxu0 %v186
    %910 = vmatpush.msra.mxu0 %v182
    %911 = vmatpush.msra.mxu0 %v178
    %912 = vmatpush.msra.mxu0 %v174
    %913 = vmatpush.msra.mxu0 %v170
    %914 = vmatpush.msra.mxu0 %v166
    %915 = vmatpush.msra.mxu0 %v162
    %916 = vmatpush.msra.mxu0 %v158
    %917 = vmatpush.msra.mxu0 %v154
    %918 = vmatpush.msra.mxu0 %v150
    %919 = vmatpush.msra.mxu0 %v146
    %920 = vmatpush.msra.mxu0 %v142
    %921 = vmatmul.f32.gmra.mxu0 %v843
    %v922 = vpop.f32.mrf.mxu0
    %v923 = vadd.f32 0.0, %v922
    %924 = vdwg.mxu0
    %v929 = vrot.slane %v863, 4
    %v930 = vrot.slane %v883, 4
    %v931 = vrot.slane %v903, 4
    %v932 = vrot.slane %v923, 4
    %v937 = vadd.f32 %v77, %v929
    %v938 = vadd.f32 %v97, %v930
    %v939 = vadd.f32 %v117, %v931
    %v940 = vadd.f32 %v137, %v932
    %v941 = vxor.u32 %v937, 2147483648
    %v942 = vxor.u32 %v938, 2147483648
    %v943 = vxor.u32 %v940, 2147483648
    %v944 = vmul.f32 %v941, 1.442695
    %v945 = vpow.pop %v944
    %v946 = vmul.f32 %v942, 1.442695
    %v947 = vpow.pop %v946
    %v948 = vmul.f32 %v943, 1.442695
    %v949 = vpow.pop %v948
    %v950 = vadd.f32 %v945, 1.0
    %v951 = vadd.f32 %v947, 1.0
    %v952 = vadd.f32 %v949, 1.0
    %v953 = vrcp.pop %v950
    %v954 = vmul.f32 %v950, %v953
    %v955 = vsub.f32 1.0, %v954
    %v956 = vmul.f32 %v953, %v955
    %v957 = vadd.f32 %v953, %v956
    %vm958 = vweird.f32 %v950
    %vm959 = vweird.f32 %v953
    %vm960 = vmor %vm958, %vm959
    %v961 = vsel %vm960, %v953, %v957
    %v962 = vand.u32 2147483647, %v950
    %vm963 = vcmp.eq.f32.partialorder %v962, 8.507059e+37
    %v964 = vand.u32 %v950, 2147483648
    %v965 = vor.u32 1.1754944e-38, %v964
    %v966 = vsel %vm963, %v965, %v961
    %v967 = vmul.f32 1.0, %v966
    %v968 = vrcp.pop %v951
    %v969 = vmul.f32 %v951, %v968
    %v970 = vsub.f32 1.0, %v969
    %v971 = vmul.f32 %v968, %v970
    %v972 = vadd.f32 %v968, %v971
    %vm973 = vweird.f32 %v951
    %vm974 = vweird.f32 %v968
    %vm975 = vmor %vm973, %vm974
    %v976 = vsel %vm975, %v968, %v972
    %v977 = vand.u32 2147483647, %v951
    %vm978 = vcmp.eq.f32.partialorder %v977, 8.507059e+37
    %v979 = vand.u32 %v951, 2147483648
    %v980 = vor.u32 1.1754944e-38, %v979
    %v981 = vsel %vm978, %v980, %v976
    %v982 = vmul.f32 1.0, %v981
    %v983 = vrcp.pop %v952
    %v984 = vmul.f32 %v952, %v983
    %v985 = vsub.f32 1.0, %v984
    %v986 = vmul.f32 %v983, %v985
    %v987 = vadd.f32 %v983, %v986
    %vm988 = vweird.f32 %v952
    %vm989 = vweird.f32 %v983
    %vm990 = vmor %vm988, %vm989
    %v991 = vsel %vm990, %v983, %v987
    %v992 = vand.u32 2147483647, %v952
    %vm993 = vcmp.eq.f32.partialorder %v992, 8.507059e+37
    %v994 = vand.u32 %v952, 2147483648
    %v995 = vor.u32 1.1754944e-38, %v994
    %v996 = vsel %vm993, %v995, %v991
    %v997 = vmul.f32 1.0, %v996
    %v998 = vtanh.pop %v939
    %v1000 = vrot.slane %v839, 7
    %v1002 = vmul.f32 %v982, %v1000
    %v1003 = vmul.f32 %v967, %v998
    %v1004 = vadd.f32 %v1002, %v1003
    %v1005 = vtanh.pop %v1004
    %v1006 = vmul.f32 %v997, %v1005
    %v1008 = vrot.slane %v1006, 4
    %1010 = vmatpush.msra.mxu0 %v199
    %1011 = vmatpush.msra.mxu0 %v195
    %1012 = vmatpush.msra.mxu0 %v191
    %1013 = vmatpush.msra.mxu0 %v187
    %1014 = vmatpush.msra.mxu0 %v183
    %1015 = vmatpush.msra.mxu0 %v179
    %1016 = vmatpush.msra.mxu0 %v175
    %1017 = vmatpush.msra.mxu0 %v171
    %1018 = vmatpush.msra.mxu0 %v167
    %1019 = vmatpush.msra.mxu0 %v163
    %1020 = vmatpush.msra.mxu0 %v159
    %1021 = vmatpush.msra.mxu0 %v155
    %1022 = vmatpush.msra.mxu0 %v151
    %1023 = vmatpush.msra.mxu0 %v147
    %1024 = vmatpush.msra.mxu0 %v143
    %1025 = vmatpush.msra.mxu0 %v139
    %1026 = vmatmul.f32.gmra.mxu0 %v1008
    %v1027 = vpop.f32.mrf.mxu0
    %v1028 = vadd.f32 0.0, %v1027
    %1029 = vdwg.mxu0
    %1030 = vmatpush.msra.mxu0 %v200
    %1031 = vmatpush.msra.mxu0 %v196
    %1032 = vmatpush.msra.mxu0 %v192
    %1033 = vmatpush.msra.mxu0 %v188
    %1034 = vmatpush.msra.mxu0 %v184
    %1035 = vmatpush.msra.mxu0 %v180
    %1036 = vmatpush.msra.mxu0 %v176
    %1037 = vmatpush.msra.mxu0 %v172
    %1038 = vmatpush.msra.mxu0 %v168
    %1039 = vmatpush.msra.mxu0 %v164
    %1040 = vmatpush.msra.mxu0 %v160
    %1041 = vmatpush.msra.mxu0 %v156
    %1042 = vmatpush.msra.mxu0 %v152
    %1043 = vmatpush.msra.mxu0 %v148
    %1044 = vmatpush.msra.mxu0 %v144
    %1045 = vmatpush.msra.mxu0 %v140
    %1046 = vmatmul.f32.gmra.mxu0 %v1008
    %v1047 = vpop.f32.mrf.mxu0
    %v1048 = vadd.f32 0.0, %v1047
    %1049 = vdwg.mxu0
    %1050 = vmatpush.msra.mxu0 %v201
    %1051 = vmatpush.msra.mxu0 %v197
    %1052 = vmatpush.msra.mxu0 %v193
    %1053 = vmatpush.msra.mxu0 %v189
    %1054 = vmatpush.msra.mxu0 %v185
    %1055 = vmatpush.msra.mxu0 %v181
    %1056 = vmatpush.msra.mxu0 %v177
    %1057 = vmatpush.msra.mxu0 %v173
    %1058 = vmatpush.msra.mxu0 %v169
    %1059 = vmatpush.msra.mxu0 %v165
    %1060 = vmatpush.msra.mxu0 %v161
    %1061 = vmatpush.msra.mxu0 %v157
    %1062 = vmatpush.msra.mxu0 %v153
    %1063 = vmatpush.msra.mxu0 %v149
    %1064 = vmatpush.msra.mxu0 %v145
    %1065 = vmatpush.msra.mxu0 %v141
    %1066 = vmatmul.f32.gmra.mxu0 %v1008
    %v1067 = vpop.f32.mrf.mxu0
    %v1068 = vadd.f32 0.0, %v1067
    %1069 = vdwg.mxu0
    %1070 = vmatpush.msra.mxu0 %v202
    %1071 = vmatpush.msra.mxu0 %v198
    %1072 = vmatpush.msra.mxu0 %v194
    %1073 = vmatpush.msra.mxu0 %v190
    %1074 = vmatpush.msra.mxu0 %v186
    %1075 = vmatpush.msra.mxu0 %v182
    %1076 = vmatpush.msra.mxu0 %v178
    %1077 = vmatpush.msra.mxu0 %v174
    %1078 = vmatpush.msra.mxu0 %v170
    %1079 = vmatpush.msra.mxu0 %v166
    %1080 = vmatpush.msra.mxu0 %v162
    %1081 = vmatpush.msra.mxu0 %v158
    %1082 = vmatpush.msra.mxu0 %v154
    %1083 = vmatpush.msra.mxu0 %v150
    %1084 = vmatpush.msra.mxu0 %v146
    %1085 = vmatpush.msra.mxu0 %v142
    %1086 = vmatmul.f32.gmra.mxu0 %v1008
    %v1087 = vpop.f32.mrf.mxu0
    %v1088 = vadd.f32 0.0, %v1087
    %1089 = vdwg.mxu0
    %v1094 = vrot.slane %v1028, 3
    %v1095 = vrot.slane %v1048, 3
    %v1096 = vrot.slane %v1068, 3
    %v1097 = vrot.slane %v1088, 3
    %v1102 = vadd.f32 %v77, %v1094
    %v1103 = vadd.f32 %v97, %v1095
    %v1104 = vadd.f32 %v117, %v1096
    %v1105 = vadd.f32 %v137, %v1097
    %v1106 = vxor.u32 %v1102, 2147483648
    %v1107 = vxor.u32 %v1103, 2147483648
    %v1108 = vxor.u32 %v1105, 2147483648
    %v1109 = vmul.f32 %v1106, 1.442695
    %v1110 = vpow.pop %v1109
    %v1111 = vmul.f32 %v1107, 1.442695
    %v1112 = vpow.pop %v1111
    %v1113 = vmul.f32 %v1108, 1.442695
    %v1114 = vpow.pop %v1113
    %v1115 = vadd.f32 %v1110, 1.0
    %v1116 = vadd.f32 %v1112, 1.0
    %v1117 = vadd.f32 %v1114, 1.0
    %v1118 = vrcp.pop %v1115
    %v1119 = vmul.f32 %v1115, %v1118
    %v1120 = vsub.f32 1.0, %v1119
    %v1121 = vmul.f32 %v1118, %v1120
    %v1122 = vadd.f32 %v1118, %v1121
    %vm1123 = vweird.f32 %v1115
    %vm1124 = vweird.f32 %v1118
    %vm1125 = vmor %vm1123, %vm1124
    %v1126 = vsel %vm1125, %v1118, %v1122
    %v1127 = vand.u32 2147483647, %v1115
    %vm1128 = vcmp.eq.f32.partialorder %v1127, 8.507059e+37
    %v1129 = vand.u32 %v1115, 2147483648
    %v1130 = vor.u32 1.1754944e-38, %v1129
    %v1131 = vsel %vm1128, %v1130, %v1126
    %v1132 = vmul.f32 1.0, %v1131
    %v1133 = vrcp.pop %v1116
    %v1134 = vmul.f32 %v1116, %v1133
    %v1135 = vsub.f32 1.0, %v1134
    %v1136 = vmul.f32 %v1133, %v1135
    %v1137 = vadd.f32 %v1133, %v1136
    %vm1138 = vweird.f32 %v1116
    %vm1139 = vweird.f32 %v1133
    %vm1140 = vmor %vm1138, %vm1139
    %v1141 = vsel %vm1140, %v1133, %v1137
    %v1142 = vand.u32 2147483647, %v1116
    %vm1143 = vcmp.eq.f32.partialorder %v1142, 8.507059e+37
    %v1144 = vand.u32 %v1116, 2147483648
    %v1145 = vor.u32 1.1754944e-38, %v1144
    %v1146 = vsel %vm1143, %v1145, %v1141
    %v1147 = vmul.f32 1.0, %v1146
    %v1148 = vrcp.pop %v1117
    %v1149 = vmul.f32 %v1117, %v1148
    %v1150 = vsub.f32 1.0, %v1149
    %v1151 = vmul.f32 %v1148, %v1150
    %v1152 = vadd.f32 %v1148, %v1151
    %vm1153 = vweird.f32 %v1117
    %vm1154 = vweird.f32 %v1148
    %vm1155 = vmor %vm1153, %vm1154
    %v1156 = vsel %vm1155, %v1148, %v1152
    %v1157 = vand.u32 2147483647, %v1117
    %vm1158 = vcmp.eq.f32.partialorder %v1157, 8.507059e+37
    %v1159 = vand.u32 %v1117, 2147483648
    %v1160 = vor.u32 1.1754944e-38, %v1159
    %v1161 = vsel %vm1158, %v1160, %v1156
    %v1162 = vmul.f32 1.0, %v1161
    %v1163 = vtanh.pop %v1104
    %v1165 = vrot.slane %v1004, 7
    %v1167 = vmul.f32 %v1147, %v1165
    %v1168 = vmul.f32 %v1132, %v1163
    %v1169 = vadd.f32 %v1167, %v1168
    %v1170 = vtanh.pop %v1169
    %v1171 = vmul.f32 %v1162, %v1170
    %v1173 = vrot.slane %v1171, 5
    %1175 = vmatpush.msra.mxu0 %v199
    %1176 = vmatpush.msra.mxu0 %v195
    %1177 = vmatpush.msra.mxu0 %v191
    %1178 = vmatpush.msra.mxu0 %v187
    %1179 = vmatpush.msra.mxu0 %v183
    %1180 = vmatpush.msra.mxu0 %v179
    %1181 = vmatpush.msra.mxu0 %v175
    %1182 = vmatpush.msra.mxu0 %v171
    %1183 = vmatpush.msra.mxu0 %v167
    %1184 = vmatpush.msra.mxu0 %v163
    %1185 = vmatpush.msra.mxu0 %v159
    %1186 = vmatpush.msra.mxu0 %v155
    %1187 = vmatpush.msra.mxu0 %v151
    %1188 = vmatpush.msra.mxu0 %v147
    %1189 = vmatpush.msra.mxu0 %v143
    %1190 = vmatpush.msra.mxu0 %v139
    %1191 = vmatmul.f32.gmra.mxu0 %v1173
    %v1192 = vpop.f32.mrf.mxu0
    %v1193 = vadd.f32 0.0, %v1192
    %1194 = vdwg.mxu0
    %1195 = vmatpush.msra.mxu0 %v200
    %1196 = vmatpush.msra.mxu0 %v196
    %1197 = vmatpush.msra.mxu0 %v192
    %1198 = vmatpush.msra.mxu0 %v188
    %1199 = vmatpush.msra.mxu0 %v184
    %1200 = vmatpush.msra.mxu0 %v180
    %1201 = vmatpush.msra.mxu0 %v176
    %1202 = vmatpush.msra.mxu0 %v172
    %1203 = vmatpush.msra.mxu0 %v168
    %1204 = vmatpush.msra.mxu0 %v164
    %1205 = vmatpush.msra.mxu0 %v160
    %1206 = vmatpush.msra.mxu0 %v156
    %1207 = vmatpush.msra.mxu0 %v152
    %1208 = vmatpush.msra.mxu0 %v148
    %1209 = vmatpush.msra.mxu0 %v144
    %1210 = vmatpush.msra.mxu0 %v140
    %1211 = vmatmul.f32.gmra.mxu0 %v1173
    %v1212 = vpop.f32.mrf.mxu0
    %v1213 = vadd.f32 0.0, %v1212
    %1214 = vdwg.mxu0
    %1215 = vmatpush.msra.mxu0 %v201
    %1216 = vmatpush.msra.mxu0 %v197
    %1217 = vmatpush.msra.mxu0 %v193
    %1218 = vmatpush.msra.mxu0 %v189
    %1219 = vmatpush.msra.mxu0 %v185
    %1220 = vmatpush.msra.mxu0 %v181
    %1221 = vmatpush.msra.mxu0 %v177
    %1222 = vmatpush.msra.mxu0 %v173
    %1223 = vmatpush.msra.mxu0 %v169
    %1224 = vmatpush.msra.mxu0 %v165
    %1225 = vmatpush.msra.mxu0 %v161
    %1226 = vmatpush.msra.mxu0 %v157
    %1227 = vmatpush.msra.mxu0 %v153
    %1228 = vmatpush.msra.mxu0 %v149
    %1229 = vmatpush.msra.mxu0 %v145
    %1230 = vmatpush.msra.mxu0 %v141
    %1231 = vmatmul.f32.gmra.mxu0 %v1173
    %v1232 = vpop.f32.mrf.mxu0
    %v1233 = vadd.f32 0.0, %v1232
    %1234 = vdwg.mxu0
    %1235 = vmatpush.msra.mxu0 %v202
    %1236 = vmatpush.msra.mxu0 %v198
    %1237 = vmatpush.msra.mxu0 %v194
    %1238 = vmatpush.msra.mxu0 %v190
    %1239 = vmatpush.msra.mxu0 %v186
    %1240 = vmatpush.msra.mxu0 %v182
    %1241 = vmatpush.msra.mxu0 %v178
    %1242 = vmatpush.msra.mxu0 %v174
    %1243 = vmatpush.msra.mxu0 %v170
    %1244 = vmatpush.msra.mxu0 %v166
    %1245 = vmatpush.msra.mxu0 %v162
    %1246 = vmatpush.msra.mxu0 %v158
    %1247 = vmatpush.msra.mxu0 %v154
    %1248 = vmatpush.msra.mxu0 %v150
    %1249 = vmatpush.msra.mxu0 %v146
    %1250 = vmatpush.msra.mxu0 %v142
    %1251 = vmatmul.f32.gmra.mxu0 %v1173
    %v1252 = vpop.f32.mrf.mxu0
    %v1253 = vadd.f32 0.0, %v1252
    %1254 = vdwg.mxu0
    %v1259 = vrot.slane %v1193, 2
    %v1260 = vrot.slane %v1213, 2
    %v1261 = vrot.slane %v1233, 2
    %v1262 = vrot.slane %v1253, 2
    %v1267 = vadd.f32 %v77, %v1259
    %v1268 = vadd.f32 %v97, %v1260
    %v1269 = vadd.f32 %v117, %v1261
    %v1270 = vadd.f32 %v137, %v1262
    %v1271 = vxor.u32 %v1267, 2147483648
    %v1272 = vxor.u32 %v1268, 2147483648
    %v1273 = vxor.u32 %v1270, 2147483648
    %v1274 = vmul.f32 %v1271, 1.442695
    %v1275 = vpow.pop %v1274
    %v1276 = vmul.f32 %v1272, 1.442695
    %v1277 = vpow.pop %v1276
    %v1278 = vmul.f32 %v1273, 1.442695
    %v1279 = vpow.pop %v1278
    %v1280 = vadd.f32 %v1275, 1.0
    %v1281 = vadd.f32 %v1277, 1.0
    %v1282 = vadd.f32 %v1279, 1.0
    %v1283 = vrcp.pop %v1280
    %v1284 = vmul.f32 %v1280, %v1283
    %v1285 = vsub.f32 1.0, %v1284
    %v1286 = vmul.f32 %v1283, %v1285
    %v1287 = vadd.f32 %v1283, %v1286
    %vm1288 = vweird.f32 %v1280
    %vm1289 = vweird.f32 %v1283
    %vm1290 = vmor %vm1288, %vm1289
    %v1291 = vsel %vm1290, %v1283, %v1287
    %v1292 = vand.u32 2147483647, %v1280
    %vm1293 = vcmp.eq.f32.partialorder %v1292, 8.507059e+37
    %v1294 = vand.u32 %v1280, 2147483648
    %v1295 = vor.u32 1.1754944e-38, %v1294
    %v1296 = vsel %vm1293, %v1295, %v1291
    %v1297 = vmul.f32 1.0, %v1296
    %v1298 = vrcp.pop %v1281
    %v1299 = vmul.f32 %v1281, %v1298
    %v1300 = vsub.f32 1.0, %v1299
    %v1301 = vmul.f32 %v1298, %v1300
    %v1302 = vadd.f32 %v1298, %v1301
    %vm1303 = vweird.f32 %v1281
    %vm1304 = vweird.f32 %v1298
    %vm1305 = vmor %vm1303, %vm1304
    %v1306 = vsel %vm1305, %v1298, %v1302
    %v1307 = vand.u32 2147483647, %v1281
    %vm1308 = vcmp.eq.f32.partialorder %v1307, 8.507059e+37
    %v1309 = vand.u32 %v1281, 2147483648
    %v1310 = vor.u32 1.1754944e-38, %v1309
    %v1311 = vsel %vm1308, %v1310, %v1306
    %v1312 = vmul.f32 1.0, %v1311
    %v1313 = vrcp.pop %v1282
    %v1314 = vmul.f32 %v1282, %v1313
    %v1315 = vsub.f32 1.0, %v1314
    %v1316 = vmul.f32 %v1313, %v1315
    %v1317 = vadd.f32 %v1313, %v1316
    %vm1318 = vweird.f32 %v1282
    %vm1319 = vweird.f32 %v1313
    %vm1320 = vmor %vm1318, %vm1319
    %v1321 = vsel %vm1320, %v1313, %v1317
    %v1322 = vand.u32 2147483647, %v1282
    %vm1323 = vcmp.eq.f32.partialorder %v1322, 8.507059e+37
    %v1324 = vand.u32 %v1282, 2147483648
    %v1325 = vor.u32 1.1754944e-38, %v1324
    %v1326 = vsel %vm1323, %v1325, %v1321
    %v1327 = vmul.f32 1.0, %v1326
    %v1328 = vtanh.pop %v1269
    %v1330 = vrot.slane %v1169, 7
    %v1332 = vmul.f32 %v1312, %v1330
    %v1333 = vmul.f32 %v1297, %v1328
    %v1334 = vadd.f32 %v1332, %v1333
    %v1335 = vtanh.pop %v1334
    %v1336 = vmul.f32 %v1327, %v1335
    %v1338 = vrot.slane %v1336, 6
    %1340 = vmatpush.msra.mxu0 %v199
    %1341 = vmatpush.msra.mxu0 %v195
    %1342 = vmatpush.msra.mxu0 %v191
    %1343 = vmatpush.msra.mxu0 %v187
    %1344 = vmatpush.msra.mxu0 %v183
    %1345 = vmatpush.msra.mxu0 %v179
    %1346 = vmatpush.msra.mxu0 %v175
    %1347 = vmatpush.msra.mxu0 %v171
    %1348 = vmatpush.msra.mxu0 %v167
    %1349 = vmatpush.msra.mxu0 %v163
    %1350 = vmatpush.msra.mxu0 %v159
    %1351 = vmatpush.msra.mxu0 %v155
    %1352 = vmatpush.msra.mxu0 %v151
    %1353 = vmatpush.msra.mxu0 %v147
    %1354 = vmatpush.msra.mxu0 %v143
    %1355 = vmatpush.msra.mxu0 %v139
    %1356 = vmatmul.f32.gmra.mxu0 %v1338
    %v1357 = vpop.f32.mrf.mxu0
    %v1358 = vadd.f32 0.0, %v1357
    %1359 = vdwg.mxu0
    %1360 = vmatpush.msra.mxu0 %v200
    %1361 = vmatpush.msra.mxu0 %v196
    %1362 = vmatpush.msra.mxu0 %v192
    %1363 = vmatpush.msra.mxu0 %v188
    %1364 = vmatpush.msra.mxu0 %v184
    %1365 = vmatpush.msra.mxu0 %v180
    %1366 = vmatpush.msra.mxu0 %v176
    %1367 = vmatpush.msra.mxu0 %v172
    %1368 = vmatpush.msra.mxu0 %v168
    %1369 = vmatpush.msra.mxu0 %v164
    %1370 = vmatpush.msra.mxu0 %v160
    %1371 = vmatpush.msra.mxu0 %v156
    %1372 = vmatpush.msra.mxu0 %v152
    %1373 = vmatpush.msra.mxu0 %v148
    %1374 = vmatpush.msra.mxu0 %v144
    %1375 = vmatpush.msra.mxu0 %v140
    %1376 = vmatmul.f32.gmra.mxu0 %v1338
    %v1377 = vpop.f32.mrf.mxu0
    %v1378 = vadd.f32 0.0, %v1377
    %1379 = vdwg.mxu0
    %1380 = vmatpush.msra.mxu0 %v201
    %1381 = vmatpush.msra.mxu0 %v197
    %1382 = vmatpush.msra.mxu0 %v193
    %1383 = vmatpush.msra.mxu0 %v189
    %1384 = vmatpush.msra.mxu0 %v185
    %1385 = vmatpush.msra.mxu0 %v181
    %1386 = vmatpush.msra.mxu0 %v177
    %1387 = vmatpush.msra.mxu0 %v173
    %1388 = vmatpush.msra.mxu0 %v169
    %1389 = vmatpush.msra.mxu0 %v165
    %1390 = vmatpush.msra.mxu0 %v161
    %1391 = vmatpush.msra.mxu0 %v157
    %1392 = vmatpush.msra.mxu0 %v153
    %1393 = vmatpush.msra.mxu0 %v149
    %1394 = vmatpush.msra.mxu0 %v145
    %1395 = vmatpush.msra.mxu0 %v141
    %1396 = vmatmul.f32.gmra.mxu0 %v1338
    %v1397 = vpop.f32.mrf.mxu0
    %v1398 = vadd.f32 0.0, %v1397
    %1399 = vdwg.mxu0
    %1400 = vmatpush.msra.mxu0 %v202
    %1401 = vmatpush.msra.mxu0 %v198
    %1402 = vmatpush.msra.mxu0 %v194
    %1403 = vmatpush.msra.mxu0 %v190
    %1404 = vmatpush.msra.mxu0 %v186
    %1405 = vmatpush.msra.mxu0 %v182
    %1406 = vmatpush.msra.mxu0 %v178
    %1407 = vmatpush.msra.mxu0 %v174
    %1408 = vmatpush.msra.mxu0 %v170
    %1409 = vmatpush.msra.mxu0 %v166
    %1410 = vmatpush.msra.mxu0 %v162
    %1411 = vmatpush.msra.mxu0 %v158
    %1412 = vmatpush.msra.mxu0 %v154
    %1413 = vmatpush.msra.mxu0 %v150
    %1414 = vmatpush.msra.mxu0 %v146
    %1415 = vmatpush.msra.mxu0 %v142
    %1416 = vmatmul.f32.gmra.mxu0 %v1338
    %v1417 = vpop.f32.mrf.mxu0
    %v1418 = vadd.f32 0.0, %v1417
    %1419 = vdwg.mxu0
    %v1424 = vrot.slane %v1358, 1
    %v1425 = vrot.slane %v1378, 1
    %v1426 = vrot.slane %v1398, 1
    %v1427 = vrot.slane %v1418, 1
    %v1432 = vadd.f32 %v77, %v1424
    %v1433 = vadd.f32 %v97, %v1425
    %v1434 = vadd.f32 %v117, %v1426
    %v1435 = vadd.f32 %v137, %v1427
    %v1436 = vxor.u32 %v1432, 2147483648
    %v1437 = vxor.u32 %v1433, 2147483648
    %v1438 = vxor.u32 %v1435, 2147483648
    %v1439 = vmul.f32 %v1436, 1.442695
    %v1440 = vpow.pop %v1439
    %v1441 = vmul.f32 %v1437, 1.442695
    %v1442 = vpow.pop %v1441
    %v1443 = vmul.f32 %v1438, 1.442695
    %v1444 = vpow.pop %v1443
    %v1445 = vadd.f32 %v1440, 1.0
    %v1446 = vadd.f32 %v1442, 1.0
    %v1447 = vadd.f32 %v1444, 1.0
    %v1448 = vrcp.pop %v1445
    %v1449 = vmul.f32 %v1445, %v1448
    %v1450 = vsub.f32 1.0, %v1449
    %v1451 = vmul.f32 %v1448, %v1450
    %v1452 = vadd.f32 %v1448, %v1451
    %vm1453 = vweird.f32 %v1445
    %vm1454 = vweird.f32 %v1448
    %vm1455 = vmor %vm1453, %vm1454
    %v1456 = vsel %vm1455, %v1448, %v1452
    %v1457 = vand.u32 2147483647, %v1445
    %vm1458 = vcmp.eq.f32.partialorder %v1457, 8.507059e+37
    %v1459 = vand.u32 %v1445, 2147483648
    %v1460 = vor.u32 1.1754944e-38, %v1459
    %v1461 = vsel %vm1458, %v1460, %v1456
    %v1462 = vmul.f32 1.0, %v1461
    %v1463 = vrcp.pop %v1446
    %v1464 = vmul.f32 %v1446, %v1463
    %v1465 = vsub.f32 1.0, %v1464
    %v1466 = vmul.f32 %v1463, %v1465
    %v1467 = vadd.f32 %v1463, %v1466
    %vm1468 = vweird.f32 %v1446
    %vm1469 = vweird.f32 %v1463
    %vm1470 = vmor %vm1468, %vm1469
    %v1471 = vsel %vm1470, %v1463, %v1467
    %v1472 = vand.u32 2147483647, %v1446
    %vm1473 = vcmp.eq.f32.partialorder %v1472, 8.507059e+37
    %v1474 = vand.u32 %v1446, 2147483648
    %v1475 = vor.u32 1.1754944e-38, %v1474
    %v1476 = vsel %vm1473, %v1475, %v1471
    %v1477 = vmul.f32 1.0, %v1476
    %v1478 = vrcp.pop %v1447
    %v1479 = vmul.f32 %v1447, %v1478
    %v1480 = vsub.f32 1.0, %v1479
    %v1481 = vmul.f32 %v1478, %v1480
    %v1482 = vadd.f32 %v1478, %v1481
    %vm1483 = vweird.f32 %v1447
    %vm1484 = vweird.f32 %v1478
    %vm1485 = vmor %vm1483, %vm1484
    %v1486 = vsel %vm1485, %v1478, %v1482
    %v1487 = vand.u32 2147483647, %v1447
    %vm1488 = vcmp.eq.f32.partialorder %v1487, 8.507059e+37
    %v1489 = vand.u32 %v1447, 2147483648
    %v1490 = vor.u32 1.1754944e-38, %v1489
    %v1491 = vsel %vm1488, %v1490, %v1486
    %v1492 = vmul.f32 1.0, %v1491
    %v1493 = vtanh.pop %v1434
    %v1495 = vrot.slane %v1334, 7
    %v1497 = vmul.f32 %v1477, %v1495
    %v1498 = vmul.f32 %v1462, %v1493
    %v1499 = vadd.f32 %v1497, %v1498
    %v1500 = vtanh.pop %v1499
    %v1501 = vmul.f32 %v1492, %v1500
    %v1502 = vld [vmem:[%s4] sm:$0xff]
    %v1503 = vld [vmem:[%s4 + $0x8] sm:$0xff]
    %v1504 = vld [vmem:[%s4 + $0x10] sm:$0xff]
    %v1505 = vld [vmem:[%s4 + $0x18] sm:$0xff]
    %v1506 = vld [vmem:[%s4 + $0x20] sm:$0xff]
    %v1507 = vld [vmem:[%s4 + $0x28] sm:$0xff]
    %v1508 = vld [vmem:[%s4 + $0x30] sm:$0xff]
    %v1509 = vld [vmem:[%s4 + $0x38] sm:$0xff]
    %v1510 = vld [vmem:[%s4 + $0x40] sm:$0xff]
    %v1511 = vld [vmem:[%s4 + $0x48] sm:$0xff]
    %v1512 = vld [vmem:[%s4 + $0x50] sm:$0xff]
    %v1513 = vld [vmem:[%s4 + $0x58] sm:$0xff]
    %v1514 = vld [vmem:[%s4 + $0x60] sm:$0xff]
    %v1515 = vld [vmem:[%s4 + $0x68] sm:$0xff]
    %v1516 = vld [vmem:[%s4 + $0x70] sm:$0xff]
    %v1517 = vld [vmem:[%s4 + $0x78] sm:$0xff]
    %v1518 = vld [vmem:[%s5] sm:$0x1]
    %v1520 = vrot.slane %v1501, 7
    %1522 = vmatpush.msra.mxu0 %v1517
    %1523 = vmatpush.msra.mxu0 %v1516
    %1524 = vmatpush.msra.mxu0 %v1515
    %1525 = vmatpush.msra.mxu0 %v1514
    %1526 = vmatpush.msra.mxu0 %v1513
    %1527 = vmatpush.msra.mxu0 %v1512
    %1528 = vmatpush.msra.mxu0 %v1511
    %1529 = vmatpush.msra.mxu0 %v1510
    %1530 = vmatpush.msra.mxu0 %v1509
    %1531 = vmatpush.msra.mxu0 %v1508
    %1532 = vmatpush.msra.mxu0 %v1507
    %1533 = vmatpush.msra.mxu0 %v1506
    %1534 = vmatpush.msra.mxu0 %v1505
    %1535 = vmatpush.msra.mxu0 %v1504
    %1536 = vmatpush.msra.mxu0 %v1503
    %1537 = vmatpush.msra.mxu0 %v1502
    %1538 = vmatmul.f32.gmra.mxu0 %v1520
    %v1539 = vpop.f32.mrf.mxu0
    %v1540 = vadd.f32 %v1518, %v1539
    %1541 = vdwg.mxu0
    %vm1542 = vcmask 122880
    %v1543 = vsel %vm1542, %v1540, -inf
    %1544 = vmax.xlane.f32.xlu0 %v1543
    %v1545 = vpop.xlane.xlu0 %1544
    %v1546 = vsub.f32 %v1540, %v1545
    %v1547 = vmul.f32 %v1546, 1.442695
    %v1548 = vpow.pop %v1547
    %v1549 = vsel %vm1542, %v1548, 0.0
    %1550 = vadd.xlane.f32.xlu0 %v1549
    %v1551 = vpop.xlane.xlu0 %1550
    %v1552 = vlog2.pop %v1551
    %v1553 = vmul.f32 %v1552, 0.6931472
    %v1554 = vadd.f32 %v1553, %v1545
    %v1555 = vsub.f32 %v1540, %v1554
    %1556 = vst.msk [vmem:[#allocation5] sm:$0x1] %vm1542, %v1555
    // Predicated region
    $region30: #{rnn_forward.1} parent=1 // pred_check
      _
    $region31: #{rnn_forward.1} parent=1 // pred_check_branch
      %1558 = sbr.rel (0) target = $region33
    $region32: #{rnn_forward.1} parent=1 // pred_region
      %1560 = vsyncadd [#allocation4], 0
      %s1562 = sshll.u32 [#allocation5], 4
      %s1563 = int_to_ptr.vmem [resolvable:$true] %s1562
      %s1564 = sshll.u32 %s6, 4
      %s1565 = int_to_ptr.hbm [resolvable:$true] %s1564
      %1567 = dma.vmem_to_hbm [thread:$0]  %s1563, 16, %s1565, [#allocation4]
    $region33: #{rnn_forward.1} parent=1 // pred_fallthru
      _
    // Predicated region
    $region34: #{rnn_forward.1} parent=1 // pred_check
      _
    $region35: #{rnn_forward.1} parent=1 // pred_check_branch
      %1569 = sbr.rel (0) target = $region37
    $region36: #{rnn_forward.1} parent=1 // pred_region
      %1571 = dma.done [#allocation4], 16
    $region37: #{rnn_forward.1} parent=1 // pred_fallthru
      _
    %1572 = vsyncpa [#allocation3], 1
    %1573 = vsyncpa [#allocation4], 1

</llo_original>
